<compile_context>
chip_gen: v7x
topology: tpu7x:2x2x1
jax: 0.10.0
libtpu: 0.0.40
codegen_flags: <defaults>
</compile_context>

<pallas_src>
import functools

import jax
import jax.numpy as jnp
from jax.experimental import pallas as pl
from jax.experimental.pallas import tpu as pltpu


def _round_up(x, m):
  return ((x + m - 1) // m) * m


def _choose_tile(m, cap=512):
  """Row-tile size (multiple of 8, <= cap) and the padded row count."""
  m8 = _round_up(max(m, 1), 8)
  tile = min(cap, m8)
  return tile, _round_up(m8, tile)


_COMPILER_PARAMS = pltpu.CompilerParams(
    dimension_semantics=("parallel",),          # shard row tiles across cores
    vmem_limit_bytes=48 * 1024 * 1024,          # explicit budget < v7x 64 MiB
)


# ---------------------------------------------------------------------------
# Pallas kernels
# ---------------------------------------------------------------------------
def _conv_bn_relu_pool_kernel(p_ref, w_ref, shift_ref, o_ref, *, tile_m):
  """One grid step of fused conv(im2col) + BN + ReLU + MaxPool(2x2).

  p_ref     : (4*tile_m, K) bf16 -- the 4 pool-candidate patch blocks, stacked
                                    along rows (candidate-major within the tile)
  w_ref     : (K, C)        bf16 -- conv weight with BN scale pre-folded
  shift_ref : (1, C)        f32  -- BN shift (conv bias folded in)
  o_ref     : (tile_m, C)   f32  -- pooled activations for this row tile
  """
  # Single MXU matmul covering all 4 pooling candidates (bf16 in, f32 acc).
  z = jnp.dot(p_ref[...], w_ref[...], preferred_element_type=jnp.float32)
  # Max over the 4 candidates first; +shift and ReLU are monotone and shared,
  # so they commute with the max (scale already lives inside w_ref).
  m0 = jnp.maximum(z[0 * tile_m:1 * tile_m], z[1 * tile_m:2 * tile_m])
  m1 = jnp.maximum(z[2 * tile_m:3 * tile_m], z[3 * tile_m:4 * tile_m])
  o_ref[...] = jnp.maximum(jnp.maximum(m0, m1) + shift_ref[...], 0.0)


def _mlp_head_kernel(x_ref, w1_ref, b1_ref, w2_ref, b2_ref, w3_ref, b3_ref,
                     o_ref):
  """Fused fc1+ReLU -> fc2+ReLU -> fc3 -> log_softmax over 128 padded lanes."""
  h = jnp.dot(x_ref[...], w1_ref[...], preferred_element_type=jnp.float32)
  h = jnp.maximum(h + b1_ref[...], 0.0)
  h = jnp.dot(h.astype(jnp.bfloat16), w2_ref[...],
              preferred_element_type=jnp.float32)
  h = jnp.maximum(h + b2_ref[...], 0.0)
  logits = jnp.dot(h.astype(jnp.bfloat16), w3_ref[...],
                   preferred_element_type=jnp.float32) + b3_ref[...]
  # Padded class columns have a -1e30 bias -> exp underflows to exactly 0, so
  # the 128-lane log_softmax matches the real 10-class log_softmax.
  m = jnp.max(logits, axis=-1, keepdims=True)
  lse = jnp.log(jnp.sum(jnp.exp(logits - m), axis=-1, keepdims=True)) + m
  o_ref[...] = logits - lse


# ---------------------------------------------------------------------------
# pallas_call wrappers
# ---------------------------------------------------------------------------
def conv_bn_relu_pool(x_nhwc, w_kc, shift, *, ksize, padding, tile_cap=512):
  """x_nhwc (N,H,W,Cin) -> pooled (N, OH//2, OW//2, Cout).

  w_kc  : (KH*KW*Cin, Cout) bf16, BN scale pre-folded (K index =
          (ky*KW + kx)*Cin + ci, matching the patch layout below).
  shift : (1, Cout) f32, BN shift with the conv bias folded in.
  """
  n, h, w, cin = x_nhwc.shape
  k, cout = w_kc.shape
  assert k == ksize * ksize * cin
  if padding:
    x_nhwc = jnp.pad(x_nhwc,
                     ((0, 0), (padding, padding), (padding, padding), (0, 0)))
    h, w = h + 2 * padding, w + 2 * padding
  x_bf16 = x_nhwc.astype(jnp.bfloat16)       # bf16 MXU operand, half the DMA

  oh, ow = h - ksize + 1, w - ksize + 1
  # im2col in plain JAX (see header TODO); inner index = (ky*KW + kx)*Cin + ci.
  cols = [x_bf16[:, ky:ky + oh, kx:kx + ow, :]
          for ky in range(ksize) for kx in range(ksize)]
  patches = jnp.concatenate(cols, axis=-1)   # (N, OH, OW, K)

  ph, pw = oh // 2, ow // 2                  # MaxPool2d(2,2) floor behavior
  m_true = n * ph * pw
  tile_m, m_pad = _choose_tile(m_true, tile_cap)
  n_tiles = m_pad // tile_m

  # 4 pooling candidates, each (M, K); interleave per tile so one row block of
  # (4*tile_m, K) holds exactly the candidates of one output tile.
  cands = []
  for dy in range(2):
    for dx in range(2):
      p = patches[:, dy:2 * ph:2, dx:2 * pw:2, :].reshape(m_true, k)
      p = jnp.pad(p, ((0, m_pad - m_true), (0, 0)))
      cands.append(p.reshape(n_tiles, tile_m, k))
  stacked = jnp.stack(cands, axis=1).reshape(n_tiles * 4 * tile_m, k)

  cost = pl.CostEstimate(
      flops=2 * 4 * m_pad * k * cout + 8 * m_pad * cout,
      transcendentals=0,
      bytes_accessed=(stacked.size * 2 + k * cout * 2 + cout * 4
                      + m_pad * cout * 4))

  out = pl.pallas_call(
      functools.partial(_conv_bn_relu_pool_kernel, tile_m=tile_m),
      out_shape=jax.ShapeDtypeStruct((m_pad, cout), jnp.float32),
      grid=(n_tiles,),
      in_specs=[
          pl.BlockSpec((4 * tile_m, k), lambda i: (i, 0)),  # streamed patches
          pl.BlockSpec((k, cout), lambda i: (0, 0)),        # resident weight
          pl.BlockSpec((1, cout), lambda i: (0, 0)),        # resident shift
      ],
      out_specs=pl.BlockSpec((tile_m, cout), lambda i: (i, 0)),
      compiler_params=_COMPILER_PARAMS,
      cost_estimate=cost,
  )(stacked, w_kc, shift)
  return out[:m_true].reshape(n, ph, pw, cout)


def mlp_head(x_flat, w1, b1, w2, b2, w3, b3, *, tile_cap=512):
  """x_flat (N, 512) bf16 -> (N, 10) f32 log-probabilities."""
  n, d = x_flat.shape
  tile_b, n_pad = _choose_tile(n, tile_cap)
  n_tiles = n_pad // tile_b
  x_pad = jnp.pad(x_flat, ((0, n_pad - n), (0, 0)))
  h1, h2, h3 = w1.shape[1], w2.shape[1], w3.shape[1]      # all 128 (padded)

  cost = pl.CostEstimate(
      flops=2 * n_pad * (d * h1 + h1 * h2 + h2 * h3) + 6 * n_pad * h3,
      transcendentals=n_pad * (h3 + 2),
      bytes_accessed=(x_pad.size * 2
                      + (d * h1 + h1 * h2 + h2 * h3) * 2
                      + (h1 + h2 + h3) * 4 + n_pad * h3 * 4))

  out = pl.pallas_call(
      _mlp_head_kernel,
      out_shape=jax.ShapeDtypeStruct((n_pad, h3), jnp.float32),
      grid=(n_tiles,),
      in_specs=[
          pl.BlockSpec((tile_b, d), lambda i: (i, 0)),      # streamed rows
          pl.BlockSpec((d, h1), lambda i: (0, 0)),          # resident weights
          pl.BlockSpec((1, h1), lambda i: (0, 0)),
          pl.BlockSpec((h1, h2), lambda i: (0, 0)),
          pl.BlockSpec((1, h2), lambda i: (0, 0)),
          pl.BlockSpec((h2, h3), lambda i: (0, 0)),
          pl.BlockSpec((1, h3), lambda i: (0, 0)),
      ],
      out_specs=pl.BlockSpec((tile_b, h3), lambda i: (i, 0)),
      compiler_params=_COMPILER_PARAMS,
      cost_estimate=cost,
  )(x_pad, w1, b1, w2, b2, w3, b3)
  return out[:n, :10]


# ---------------------------------------------------------------------------
# Parameters (deterministic, synthetic), pre-packed into kernel-ready layout
# ---------------------------------------------------------------------------
def init_params(key):
  ks = jax.random.split(key, 10)
  eps = 1e-5
  p = {}

  # Conv weights generated as (KH, KW, Cin, Cout) (== PyTorch (Cout,Cin,KH,KW)
  # transposed (2,3,1,0)); BatchNorm2d eval stats folded: scale into W,
  # (bias - mean)*scale + beta into the shift.
  def conv_bn(kw_key, kb_key, kh, kw, cin, cout, std):
    wconv = std * jax.random.normal(kw_key, (kh, kw, cin, cout), jnp.float32)
    bconv = std * jax.random.normal(kb_key, (cout,), jnp.float32)
    gamma = jnp.ones((cout,), jnp.float32)
    beta = jnp.zeros((cout,), jnp.float32)
    mean = jnp.zeros((cout,), jnp.float32)
    var = jnp.ones((cout,), jnp.float32)
    scale = gamma / jnp.sqrt(var + eps)
    shift = beta + (bconv - mean) * scale
    w_scaled = (wconv * scale).reshape(kh * kw * cin, cout)
    return w_scaled.astype(jnp.bfloat16), shift.reshape(1, cout)

  p["wc1"], p["shift1"] = conv_bn(ks[0], ks[1], 5, 5, 1, 16, 0.10)
  p["wc2"], p["shift2"] = conv_bn(ks[2], ks[3], 5, 5, 16, 32, 0.05)

  # fc1: PyTorch weight is (120, 512) with input index c*16 + h*4 + w (NCHW
  # flatten). We flatten the conv output in NHWC order, so permute the input
  # columns once here to (h*128 + w*32 + c), transpose to (in, out), zero-pad
  # 120 -> 128 output columns and cast to bf16.
  w1_torch = 0.05 * jax.random.normal(ks[4], (120, 512), jnp.float32)
  b1 = 0.05 * jax.random.normal(ks[5], (120,), jnp.float32)
  hh, ww, cc = jnp.meshgrid(jnp.arange(4), jnp.arange(4), jnp.arange(32),
                            indexing="ij")
  chw_index = (cc * 16 + hh * 4 + ww).reshape(-1)        # NHWC pos -> NCHW pos
  w1_hwc = w1_torch[:, chw_index].T                      # (512_in_hwc, 120)
  p["w1"] = jnp.pad(w1_hwc, ((0, 0), (0, 8))).astype(jnp.bfloat16)  # (512,128)
  p["b1"] = jnp.pad(b1, (0, 8)).reshape(1, 128)

  # fc2: (120, 84) zero-padded to (128, 128).
  w2 = 0.05 * jax.random.normal(ks[6], (120, 84), jnp.float32)
  b2 = 0.05 * jax.random.normal(ks[7], (84,), jnp.float32)
  p["w2"] = jnp.pad(w2, ((0, 8), (0, 44))).astype(jnp.bfloat16)
  p["b2"] = jnp.pad(b2, (0, 44)).reshape(1, 128)

  # fc3: (84, 10) zero-padded to (128, 128); padded class columns get a -1e30
  # bias so the in-kernel 128-lane log_softmax equals the 10-class one.
  w3 = 0.05 * jax.random.normal(ks[8], (84, 10), jnp.float32)
  b3 = 0.05 * jax.random.normal(ks[9], (10,), jnp.float32)
  p["w3"] = jnp.pad(w3, ((0, 44), (0, 118))).astype(jnp.bfloat16)
  p["b3"] = jnp.pad(b3, (0, 118), constant_values=-1e30).reshape(1, 128)
  return p


def fashion_cnn_forward(params, x_nchw):
  """x_nchw: (N, 1, 28, 28) float32 -> (N, 10) log_softmax outputs."""
  n = x_nchw.shape[0]
  x = jnp.transpose(x_nchw, (0, 2, 3, 1))                       # NCHW -> NHWC
  # layer1: Conv2d(1,16,5,pad=1)+BN+ReLU+MaxPool(2,2)           -> (N,13,13,16)
  x = conv_bn_relu_pool(x, params["wc1"], params["shift1"], ksize=5, padding=1)
  # layer2: Conv2d(16,32,5)+BN+ReLU+MaxPool(2)                  -> (N,4,4,32)
  x = conv_bn_relu_pool(x, params["wc2"], params["shift2"], ksize=5, padding=0)
  # NHWC flatten feeds fc1 directly (fc1 rows were permuted at init).
  x = x.reshape(n, 32 * 4 * 4).astype(jnp.bfloat16)
  return mlp_head(x, params["w1"], params["b1"], params["w2"], params["b2"],
                  params["w3"], params["b3"])


# ---------------------------------------------------------------------------
# Pure-JAX reference (lax.conv / reduce_window) for correctness checking
# ---------------------------------------------------------------------------
def _reference_forward(params, x_nchw):
  x = jnp.transpose(x_nchw, (0, 2, 3, 1)).astype(jnp.float32)

  def block(x, w_kc, shift, ksize, padding):
    cin, cout = x.shape[-1], w_kc.shape[-1]
    w = w_kc.astype(jnp.float32).reshape(ksize, ksize, cin, cout)
    if padding:
      x = jnp.pad(x, ((0, 0), (padding, padding), (padding, padding), (0, 0)))
    y = jax.lax.conv_general_dilated(
        x, w, window_strides=(1, 1), padding="VALID",
        dimension_numbers=("NHWC", "HWIO", "NHWC"))
    y = jnp.maximum(y + shift.reshape(1, 1, 1, cout), 0.0)
    return jax.lax.reduce_window(y, -jnp.inf, jax.lax.max,
                                 (1, 2, 2, 1), (1, 2, 2, 1), "VALID")

  x = block(x, params["wc1"], params["shift1"], 5, 1)
  x = block(x, params["wc2"], params["shift2"], 5, 0)
  h = x.reshape(x.shape[0], -1)
  h = jnp.maximum(h @ params["w1"].astype(jnp.float32) + params["b1"], 0.0)
  h = jnp.maximum(h @ params["w2"].astype(jnp.float32) + params["b2"], 0.0)
  logits = h @ params["w3"].astype(jnp.float32)[:, :10] + params["b3"][:, :10]
  return jax.nn.log_softmax(logits, axis=-1)


if __name__ == "__main__":
  key = jax.random.PRNGKey(0)
  k_params, k_x = jax.random.split(key)
  params = init_params(k_params)
  # FashionMNIST-shaped input (fc1 in_features=512 requires 28x28), batch=2.
  x = jax.random.normal(k_x, (2, 1, 28, 28), jnp.float32)

  fwd = jax.jit(fashion_cnn_forward)
  out = jax.block_until_ready(fwd(params, x))

  assert out.shape == (2, 10), out.shape
  assert bool(jnp.all(jnp.isfinite(out)))
  # log_softmax rows must exponentiate-sum to 1.
  assert bool(jnp.allclose(jnp.sum(jnp.exp(out), axis=1), 1.0, atol=1e-3))
  # Compare against a pure-JAX reference (bf16 MXU operands -> loose atol).
  ref = _reference_forward(params, x)
  assert bool(jnp.allclose(out, ref, atol=1e-1)), (out, ref)
  print("KERNEL_OK")
</pallas_src>

<mosaic_0001>
module attributes {stable_mosaic.version = 11 : i64} {
  func.func @_conv_bn_relu_pool_kernel(%arg0: i32, %arg1: memref<1376x25xbf16, #tpu.memory_space<vmem>>, %arg2: memref<25x16xbf16, #tpu.memory_space<vmem>>, %arg3: memref<1x16xf32, #tpu.memory_space<vmem>>, %arg4: memref<344x16xf32, #tpu.memory_space<vmem>>) attributes {dimension_semantics = [#tpu.dimension_semantics<parallel>], iteration_bounds = array<i64: 1>, scalar_prefetch = 0 : i64, scratch_operands = 0 : i64, tpu.core_type = #tpu.core_type<tc>, window_params = [{transform_indices = @transform_0, window_bounds = array<i64: 1376, 25>}, {pipeline_mode = #tpu.pipeline_mode<synchronous>, transform_indices = @transform_1, window_bounds = array<i64: 25, 16>}, {pipeline_mode = #tpu.pipeline_mode<synchronous>, transform_indices = @transform_2, window_bounds = array<i64: 1, 16>}, {transform_indices = @transform_3, window_bounds = array<i64: 344, 16>}]} {
    %c0 = arith.constant 0 : index
    %c0_0 = arith.constant 0 : index
    %0 = vector.load %arg1[%c0, %c0_0] : memref<1376x25xbf16, #tpu.memory_space<vmem>>, vector<1376x25xbf16>
    %c0_1 = arith.constant 0 : index
    %c0_2 = arith.constant 0 : index
    %1 = vector.load %arg2[%c0_1, %c0_2] : memref<25x16xbf16, #tpu.memory_space<vmem>>, vector<25x16xbf16>
    %cst = arith.constant dense<0.000000e+00> : vector<1376x16xf32>
    %2 = tpu.matmul %0, %1, %cst {dimension_numbers = #tpu.dot_dimension_numbers<[1], [0], [0], [1], [0, 0, 1, 1], [], []>} : vector<1376x25xbf16>, vector<25x16xbf16>, vector<1376x16xf32> -> vector<1376x16xf32>
    %3 = vector.extract_strided_slice %2 {offsets = [0, 0], sizes = [344, 16], strides = [1, 1]} : vector<1376x16xf32> to vector<344x16xf32>
    %4 = vector.extract_strided_slice %2 {offsets = [344, 0], sizes = [344, 16], strides = [1, 1]} : vector<1376x16xf32> to vector<344x16xf32>
    %5 = arith.maximumf %3, %4 : vector<344x16xf32>
    %6 = vector.extract_strided_slice %2 {offsets = [688, 0], sizes = [344, 16], strides = [1, 1]} : vector<1376x16xf32> to vector<344x16xf32>
    %7 = vector.extract_strided_slice %2 {offsets = [1032, 0], sizes = [344, 16], strides = [1, 1]} : vector<1376x16xf32> to vector<344x16xf32>
    %8 = arith.maximumf %6, %7 : vector<344x16xf32>
    %9 = arith.maximumf %5, %8 : vector<344x16xf32>
    %c0_3 = arith.constant 0 : index
    %c0_4 = arith.constant 0 : index
    %10 = vector.load %arg3[%c0_3, %c0_4] : memref<1x16xf32, #tpu.memory_space<vmem>>, vector<1x16xf32>
    %11 = vector.broadcast %10 : vector<1x16xf32> to vector<344x16xf32>
    %12 = arith.addf %9, %11 : vector<344x16xf32>
    %cst_5 = arith.constant 0.000000e+00 : f32
    %13 = vector.broadcast %cst_5 : f32 to vector<344x16xf32>
    %14 = arith.maximumf %12, %13 : vector<344x16xf32>
    %c0_6 = arith.constant 0 : index
    %c0_7 = arith.constant 0 : index
    %15 = vector.load %arg4[%c0_6, %c0_7] : memref<344x16xf32, #tpu.memory_space<vmem>>, vector<344x16xf32>
    tpu.vector_store %arg4[%c0_6, %c0_7], %14 {strides = array<i32>} : memref<344x16xf32, #tpu.memory_space<vmem>>, vector<344x16xf32>,
    return
  }
  func.func @transform_0(%arg0: i32) -> (i32, i32) {
    %c0_i32 = arith.constant 0 : i32
    %c0_i32_0 = arith.constant 0 : i32
    return %arg0, %c0_i32 : i32, i32
  }
  func.func @transform_1(%arg0: i32) -> (i32, i32) {
    %c0_i32 = arith.constant 0 : i32
    %c0_i32_0 = arith.constant 0 : i32
    %c0_i32_1 = arith.constant 0 : i32
    return %c0_i32, %c0_i32_0 : i32, i32
  }
  func.func @transform_2(%arg0: i32) -> (i32, i32) {
    %c0_i32 = arith.constant 0 : i32
    %c0_i32_0 = arith.constant 0 : i32
    %c0_i32_1 = arith.constant 0 : i32
    return %c0_i32, %c0_i32_0 : i32, i32
  }
  func.func @transform_3(%arg0: i32) -> (i32, i32) {
    %c0_i32 = arith.constant 0 : i32
    %c0_i32_0 = arith.constant 0 : i32
    return %arg0, %c0_i32 : i32, i32
  }
}

module attributes {stable_mosaic.version = 11 : i64} {
  func.func @_conv_bn_relu_pool_kernel(%arg0: i32, %arg1: memref<128x400xbf16, #tpu.memory_space<vmem>>, %arg2: memref<400x32xbf16, #tpu.memory_space<vmem>>, %arg3: memref<1x32xf32, #tpu.memory_space<vmem>>, %arg4: memref<32x32xf32, #tpu.memory_space<vmem>>) attributes {dimension_semantics = [#tpu.dimension_semantics<parallel>], iteration_bounds = array<i64: 1>, scalar_prefetch = 0 : i64, scratch_operands = 0 : i64, tpu.core_type = #tpu.core_type<tc>, window_params = [{transform_indices = @transform_0, window_bounds = array<i64: 128, 400>}, {pipeline_mode = #tpu.pipeline_mode<synchronous>, transform_indices = @transform_1, window_bounds = array<i64: 400, 32>}, {pipeline_mode = #tpu.pipeline_mode<synchronous>, transform_indices = @transform_2, window_bounds = array<i64: 1, 32>}, {transform_indices = @transform_3, window_bounds = array<i64: 32, 32>}]} {
    %c0 = arith.constant 0 : index
    %c0_0 = arith.constant 0 : index
    %0 = vector.load %arg1[%c0, %c0_0] : memref<128x400xbf16, #tpu.memory_space<vmem>>, vector<128x400xbf16>
    %c0_1 = arith.constant 0 : index
    %c0_2 = arith.constant 0 : index
    %1 = vector.load %arg2[%c0_1, %c0_2] : memref<400x32xbf16, #tpu.memory_space<vmem>>, vector<400x32xbf16>
    %cst = arith.constant dense<0.000000e+00> : vector<128x32xf32>
    %2 = tpu.matmul %0, %1, %cst {dimension_numbers = #tpu.dot_dimension_numbers<[1], [0], [0], [1], [0, 0, 1, 1], [], []>} : vector<128x400xbf16>, vector<400x32xbf16>, vector<128x32xf32> -> vector<128x32xf32>
    %3 = vector.extract_strided_slice %2 {offsets = [0, 0], sizes = [32, 32], strides = [1, 1]} : vector<128x32xf32> to vector<32x32xf32>
    %4 = vector.extract_strided_slice %2 {offsets = [32, 0], sizes = [32, 32], strides = [1, 1]} : vector<128x32xf32> to vector<32x32xf32>
    %5 = arith.maximumf %3, %4 : vector<32x32xf32>
    %6 = vector.extract_strided_slice %2 {offsets = [64, 0], sizes = [32, 32], strides = [1, 1]} : vector<128x32xf32> to vector<32x32xf32>
    %7 = vector.extract_strided_slice %2 {offsets = [96, 0], sizes = [32, 32], strides = [1, 1]} : vector<128x32xf32> to vector<32x32xf32>
    %8 = arith.maximumf %6, %7 : vector<32x32xf32>
    %9 = arith.maximumf %5, %8 : vector<32x32xf32>
    %c0_3 = arith.constant 0 : index
    %c0_4 = arith.constant 0 : index
    %10 = vector.load %arg3[%c0_3, %c0_4] : memref<1x32xf32, #tpu.memory_space<vmem>>, vector<1x32xf32>
    %11 = vector.broadcast %10 : vector<1x32xf32> to vector<32x32xf32>
    %12 = arith.addf %9, %11 : vector<32x32xf32>
    %cst_5 = arith.constant 0.000000e+00 : f32
    %13 = vector.broadcast %cst_5 : f32 to vector<32x32xf32>
    %14 = arith.maximumf %12, %13 : vector<32x32xf32>
    %c0_6 = arith.constant 0 : index
    %c0_7 = arith.constant 0 : index
    %15 = vector.load %arg4[%c0_6, %c0_7] : memref<32x32xf32, #tpu.memory_space<vmem>>, vector<32x32xf32>
    tpu.vector_store %arg4[%c0_6, %c0_7], %14 {strides = array<i32>} : memref<32x32xf32, #tpu.memory_space<vmem>>, vector<32x32xf32>,
    return
  }
  func.func @transform_0(%arg0: i32) -> (i32, i32) {
    %c0_i32 = arith.constant 0 : i32
    %c0_i32_0 = arith.constant 0 : i32
    return %arg0, %c0_i32 : i32, i32
  }
  func.func @transform_1(%arg0: i32) -> (i32, i32) {
    %c0_i32 = arith.constant 0 : i32
    %c0_i32_0 = arith.constant 0 : i32
    %c0_i32_1 = arith.constant 0 : i32
    return %c0_i32, %c0_i32_0 : i32, i32
  }
  func.func @transform_2(%arg0: i32) -> (i32, i32) {
    %c0_i32 = arith.constant 0 : i32
    %c0_i32_0 = arith.constant 0 : i32
    %c0_i32_1 = arith.constant 0 : i32
    return %c0_i32, %c0_i32_0 : i32, i32
  }
  func.func @transform_3(%arg0: i32) -> (i32, i32) {
    %c0_i32 = arith.constant 0 : i32
    %c0_i32_0 = arith.constant 0 : i32
    return %arg0, %c0_i32 : i32, i32
  }
}

module attributes {stable_mosaic.version = 11 : i64} {
  func.func @_mlp_head_kernel(%arg0: i32, %arg1: memref<8x512xbf16, #tpu.memory_space<vmem>>, %arg2: memref<512x128xbf16, #tpu.memory_space<vmem>>, %arg3: memref<1x128xf32, #tpu.memory_space<vmem>>, %arg4: memref<128x128xbf16, #tpu.memory_space<vmem>>, %arg5: memref<1x128xf32, #tpu.memory_space<vmem>>, %arg6: memref<128x128xbf16, #tpu.memory_space<vmem>>, %arg7: memref<1x128xf32, #tpu.memory_space<vmem>>, %arg8: memref<8x128xf32, #tpu.memory_space<vmem>>) attributes {dimension_semantics = [#tpu.dimension_semantics<parallel>], iteration_bounds = array<i64: 1>, scalar_prefetch = 0 : i64, scratch_operands = 0 : i64, tpu.core_type = #tpu.core_type<tc>, window_params = [{transform_indices = @transform_0, window_bounds = array<i64: 8, 512>}, {pipeline_mode = #tpu.pipeline_mode<synchronous>, transform_indices = @transform_1, window_bounds = array<i64: 512, 128>}, {pipeline_mode = #tpu.pipeline_mode<synchronous>, transform_indices = @transform_2, window_bounds = array<i64: 1, 128>}, {pipeline_mode = #tpu.pipeline_mode<synchronous>, transform_indices = @transform_3, window_bounds = array<i64: 128, 128>}, {pipeline_mode = #tpu.pipeline_mode<synchronous>, transform_indices = @transform_4, window_bounds = array<i64: 1, 128>}, {pipeline_mode = #tpu.pipeline_mode<synchronous>, transform_indices = @transform_5, window_bounds = array<i64: 128, 128>}, {pipeline_mode = #tpu.pipeline_mode<synchronous>, transform_indices = @transform_6, window_bounds = array<i64: 1, 128>}, {transform_indices = @transform_7, window_bounds = array<i64: 8, 128>}]} {
    %c0 = arith.constant 0 : index
    %c0_0 = arith.constant 0 : index
    %0 = vector.load %arg1[%c0, %c0_0] : memref<8x512xbf16, #tpu.memory_space<vmem>>, vector<8x512xbf16>
    %c0_1 = arith.constant 0 : index
    %c0_2 = arith.constant 0 : index
    %1 = vector.load %arg2[%c0_1, %c0_2] : memref<512x128xbf16, #tpu.memory_space<vmem>>, vector<512x128xbf16>
    %cst = arith.constant dense<0.000000e+00> : vector<8x128xf32>
    %2 = tpu.matmul %0, %1, %cst {dimension_numbers = #tpu.dot_dimension_numbers<[1], [0], [0], [1], [0, 0, 1, 1], [], []>} : vector<8x512xbf16>, vector<512x128xbf16>, vector<8x128xf32> -> vector<8x128xf32>
    %c0_3 = arith.constant 0 : index
    %c0_4 = arith.constant 0 : index
    %3 = vector.load %arg3[%c0_3, %c0_4] : memref<1x128xf32, #tpu.memory_space<vmem>>, vector<1x128xf32>
    %4 = vector.broadcast %3 : vector<1x128xf32> to vector<8x128xf32>
    %5 = arith.addf %2, %4 : vector<8x128xf32>
    %cst_5 = arith.constant 0.000000e+00 : f32
    %6 = vector.broadcast %cst_5 : f32 to vector<8x128xf32>
    %7 = arith.maximumf %5, %6 : vector<8x128xf32>
    %8 = arith.truncf %7 : vector<8x128xf32> to vector<8x128xbf16>
    %c0_6 = arith.constant 0 : index
    %c0_7 = arith.constant 0 : index
    %9 = vector.load %arg4[%c0_6, %c0_7] : memref<128x128xbf16, #tpu.memory_space<vmem>>, vector<128x128xbf16>
    %cst_8 = arith.constant dense<0.000000e+00> : vector<8x128xf32>
    %10 = tpu.matmul %8, %9, %cst_8 {dimension_numbers = #tpu.dot_dimension_numbers<[1], [0], [0], [1], [0, 0, 1, 1], [], []>} : vector<8x128xbf16>, vector<128x128xbf16>, vector<8x128xf32> -> vector<8x128xf32>
    %c0_9 = arith.constant 0 : index
    %c0_10 = arith.constant 0 : index
    %11 = vector.load %arg5[%c0_9, %c0_10] : memref<1x128xf32, #tpu.memory_space<vmem>>, vector<1x128xf32>
    %12 = vector.broadcast %11 : vector<1x128xf32> to vector<8x128xf32>
    %13 = arith.addf %10, %12 : vector<8x128xf32>
    %cst_11 = arith.constant 0.000000e+00 : f32
    %14 = vector.broadcast %cst_11 : f32 to vector<8x128xf32>
    %15 = arith.maximumf %13, %14 : vector<8x128xf32>
    %16 = arith.truncf %15 : vector<8x128xf32> to vector<8x128xbf16>
    %c0_12 = arith.constant 0 : index
    %c0_13 = arith.constant 0 : index
    %17 = vector.load %arg6[%c0_12, %c0_13] : memref<128x128xbf16, #tpu.memory_space<vmem>>, vector<128x128xbf16>
    %cst_14 = arith.constant dense<0.000000e+00> : vector<8x128xf32>
    %18 = tpu.matmul %16, %17, %cst_14 {dimension_numbers = #tpu.dot_dimension_numbers<[1], [0], [0], [1], [0, 0, 1, 1], [], []>} : vector<8x128xbf16>, vector<128x128xbf16>, vector<8x128xf32> -> vector<8x128xf32>
    %c0_15 = arith.constant 0 : index
    %c0_16 = arith.constant 0 : index
    %19 = vector.load %arg7[%c0_15, %c0_16] : memref<1x128xf32, #tpu.memory_space<vmem>>, vector<1x128xf32>
    %20 = vector.broadcast %19 : vector<1x128xf32> to vector<8x128xf32>
    %21 = arith.addf %18, %20 : vector<8x128xf32>
    %cst_17 = arith.constant dense<0xFF800000> : vector<8xf32>
    %22 = vector.multi_reduction <maximumf>, %21, %cst_17 [1] : vector<8x128xf32> to vector<8xf32>
    %23 = vector.shape_cast %22 : vector<8xf32> to vector<8x1xf32>
    %24 = vector.broadcast %23 : vector<8x1xf32> to vector<8x128xf32>
    %25 = arith.subf %21, %24 : vector<8x128xf32>
    %26 = math.exp %25 : vector<8x128xf32>
    %cst_18 = arith.constant dense<0.000000e+00> : vector<8xf32>
    %27 = vector.multi_reduction <add>, %26, %cst_18 [1] : vector<8x128xf32> to vector<8xf32>
    %28 = vector.shape_cast %27 : vector<8xf32> to vector<8x1xf32>
    %29 = math.log %28 : vector<8x1xf32>
    %30 = arith.addf %29, %23 : vector<8x1xf32>
    %31 = vector.broadcast %30 : vector<8x1xf32> to vector<8x128xf32>
    %32 = arith.subf %21, %31 : vector<8x128xf32>
    %c0_19 = arith.constant 0 : index
    %c0_20 = arith.constant 0 : index
    %33 = vector.load %arg8[%c0_19, %c0_20] : memref<8x128xf32, #tpu.memory_space<vmem>>, vector<8x128xf32>
    tpu.vector_store %arg8[%c0_19, %c0_20], %32 {strides = array<i32>} : memref<8x128xf32, #tpu.memory_space<vmem>>, vector<8x128xf32>,
    return
  }
  func.func @transform_0(%arg0: i32) -> (i32, i32) {
    %c0_i32 = arith.constant 0 : i32
    %c0_i32_0 = arith.constant 0 : i32
    return %arg0, %c0_i32 : i32, i32
  }
  func.func @transform_1(%arg0: i32) -> (i32, i32) {
    %c0_i32 = arith.constant 0 : i32
    %c0_i32_0 = arith.constant 0 : i32
    %c0_i32_1 = arith.constant 0 : i32
    return %c0_i32, %c0_i32_0 : i32, i32
  }
  func.func @transform_2(%arg0: i32) -> (i32, i32) {
    %c0_i32 = arith.constant 0 : i32
    %c0_i32_0 = arith.constant 0 : i32
    %c0_i32_1 = arith.constant 0 : i32
    return %c0_i32, %c0_i32_0 : i32, i32
  }
  func.func @transform_3(%arg0: i32) -> (i32, i32) {
    %c0_i32 = arith.constant 0 : i32
    %c0_i32_0 = arith.constant 0 : i32
    %c0_i32_1 = arith.constant 0 : i32
    return %c0_i32, %c0_i32_0 : i32, i32
  }
  func.func @transform_4(%arg0: i32) -> (i32, i32) {
    %c0_i32 = arith.constant 0 : i32
    %c0_i32_0 = arith.constant 0 : i32
    %c0_i32_1 = arith.constant 0 : i32
    return %c0_i32, %c0_i32_0 : i32, i32
  }
  func.func @transform_5(%arg0: i32) -> (i32, i32) {
    %c0_i32 = arith.constant 0 : i32
    %c0_i32_0 = arith.constant 0 : i32
    %c0_i32_1 = arith.constant 0 : i32
    return %c0_i32, %c0_i32_0 : i32, i32
  }
  func.func @transform_6(%arg0: i32) -> (i32, i32) {
    %c0_i32 = arith.constant 0 : i32
    %c0_i32_0 = arith.constant 0 : i32
    %c0_i32_1 = arith.constant 0 : i32
    return %c0_i32, %c0_i32_0 : i32, i32
  }
  func.func @transform_7(%arg0: i32) -> (i32, i32) {
    %c0_i32 = arith.constant 0 : i32
    %c0_i32_0 = arith.constant 0 : i32
    return %arg0, %c0_i32 : i32, i32
  }
}

</mosaic_0001>

<llo_original>
// kernel: fashion_cnn_forward.3
$region0: #{fashion_cnn_forward.3}
  #allocation0 [shape = 'u32[]', space=smem, size = 0x4, offset = 0x4, fixed_abs, tag = 'smem constant byte address 0x4 - core index']
  #allocation1 [shape = 'u32[144,128]{1,0:T(1,128)}', space=vmem, size = 0x12000, scoped, tag = 'internal scratch']
  %s0 = inlined_call_operand.vmem [shape: bf16[1376,25], index: 0, kind: input, shape index: {}]
  %s1 = inlined_call_operand.vmem [shape: bf16[25,16], index: 1, kind: input, shape index: {}]
  %s2 = inlined_call_operand.vmem [shape: f32[1,16], index: 2, kind: input, shape index: {}]
  %s3 = inlined_call_operand.vmem [shape: f32[344,16], index: 3, kind: output, shape index: {}]
  %s4 = sld [smem:[#allocation0]]
  $region22: #{fashion_cnn_forward.3} parent=0
    _
  %s6 = ssub.s32 1, %s4
  %s7 = scalar_select 0, %s6, %s4
  // Predicated region
  $region2: #{fashion_cnn_forward.3} parent=0 // pred_check
    _
  $region3: #{fashion_cnn_forward.3} parent=0 // pred_check_branch
    %9 = sbr.rel (0) target = $region5
  $region4: #{fashion_cnn_forward.3} parent=0 // pred_region
    _
  $region5: #{fashion_cnn_forward.3} parent=0 // pred_fallthru
    _
  // Predicated region
  $region6: #{fashion_cnn_forward.3} parent=0 // pred_check
    _
  $region7: #{fashion_cnn_forward.3} parent=0 // pred_check_branch
    %11 = sbr.rel (0) target = $region9
  $region8: #{fashion_cnn_forward.3} parent=0 // pred_region
    _
  $region9: #{fashion_cnn_forward.3} parent=0 // pred_fallthru
    _
  // Predicated region
  $region10: #{fashion_cnn_forward.3} parent=0 // pred_check
    _
  $region11: #{fashion_cnn_forward.3} parent=0 // pred_check_branch
    %13 = sbr.rel (0) target = $region13
  $region12: #{fashion_cnn_forward.3} parent=0 // pred_region
    _
  $region13: #{fashion_cnn_forward.3} parent=0 // pred_fallthru
    _
  %v15 = vld [vmem:[%s0] sm:$0xf]
  %v16 = vld [vmem:[%s0 + $0x4] sm:$0xf]
  %v17 = vld [vmem:[%s0 + $0x8] sm:$0xf]
  %v18 = vld [vmem:[%s0 + $0xc] sm:$0xf]
  %v19 = vld [vmem:[%s0 + $0x10] sm:$0xf]
  %v20 = vld [vmem:[%s0 + $0x14] sm:$0xf]
  %v21 = vld [vmem:[%s0 + $0x18] sm:$0xf]
  %v22 = vld [vmem:[%s0 + $0x1c] sm:$0xf]
  %v23 = vld [vmem:[%s0 + $0x20] sm:$0xf]
  %v24 = vld [vmem:[%s0 + $0x24] sm:$0xf]
  %v25 = vld [vmem:[%s0 + $0x28] sm:$0xf]
  %v26 = vld [vmem:[%s0 + $0x2c] sm:$0xf]
  %v27 = vld [vmem:[%s0 + $0x30] sm:$0xf]
  %v28 = vld [vmem:[%s0 + $0x34] sm:$0xf]
  %v29 = vld [vmem:[%s0 + $0x38] sm:$0xf]
  %v30 = vld [vmem:[%s0 + $0x3c] sm:$0xf]
  %v31 = vld [vmem:[%s0 + $0x40] sm:$0xf]
  %v32 = vld [vmem:[%s0 + $0x44] sm:$0xf]
  %v33 = vld [vmem:[%s0 + $0x48] sm:$0xf]
  %v34 = vld [vmem:[%s0 + $0x4c] sm:$0xf]
  %v35 = vld [vmem:[%s0 + $0x50] sm:$0xf]
  %v36 = vld [vmem:[%s0 + $0x54] sm:$0xf]
  %v37 = vld [vmem:[%s0 + $0x58] sm:$0xf]
  %v38 = vld [vmem:[%s0 + $0x5c] sm:$0xf]
  %v39 = vld [vmem:[%s0 + $0x60] sm:$0xf]
  %v40 = vld [vmem:[%s0 + $0x64] sm:$0xf]
  %v41 = vld [vmem:[%s0 + $0x68] sm:$0xf]
  %v42 = vld [vmem:[%s0 + $0x6c] sm:$0xf]
  %v43 = vld [vmem:[%s0 + $0x70] sm:$0xf]
  %v44 = vld [vmem:[%s0 + $0x74] sm:$0xf]
  %v45 = vld [vmem:[%s0 + $0x78] sm:$0xf]
  %v46 = vld [vmem:[%s0 + $0x7c] sm:$0xf]
  %v47 = vld [vmem:[%s0 + $0x80] sm:$0xf]
  %v48 = vld [vmem:[%s0 + $0x84] sm:$0xf]
  %v49 = vld [vmem:[%s0 + $0x88] sm:$0xf]
  %v50 = vld [vmem:[%s0 + $0x8c] sm:$0xf]
  %v51 = vld [vmem:[%s0 + $0x90] sm:$0xf]
  %v52 = vld [vmem:[%s0 + $0x94] sm:$0xf]
  %v53 = vld [vmem:[%s0 + $0x98] sm:$0xf]
  %v54 = vld [vmem:[%s0 + $0x9c] sm:$0xf]
  %v55 = vld [vmem:[%s0 + $0xa0] sm:$0xf]
  %v56 = vld [vmem:[%s0 + $0xa4] sm:$0xf]
  %v57 = vld [vmem:[%s0 + $0xa8] sm:$0xf]
  %v58 = vld [vmem:[%s0 + $0xac] sm:$0xf]
  %v59 = vld [vmem:[%s0 + $0xb0] sm:$0xf]
  %v60 = vld [vmem:[%s0 + $0xb4] sm:$0xf]
  %v61 = vld [vmem:[%s0 + $0xb8] sm:$0xf]
  %v62 = vld [vmem:[%s0 + $0xbc] sm:$0xf]
  %v63 = vld [vmem:[%s0 + $0xc0] sm:$0xf]
  %v64 = vld [vmem:[%s0 + $0xc4] sm:$0xf]
  %v65 = vld [vmem:[%s0 + $0xc8] sm:$0xf]
  %v66 = vld [vmem:[%s0 + $0xcc] sm:$0xf]
  %v67 = vld [vmem:[%s0 + $0xd0] sm:$0xf]
  %v68 = vld [vmem:[%s0 + $0xd4] sm:$0xf]
  %v69 = vld [vmem:[%s0 + $0xd8] sm:$0xf]
  %v70 = vld [vmem:[%s0 + $0xdc] sm:$0xf]
  %v71 = vld [vmem:[%s0 + $0xe0] sm:$0xf]
  %v72 = vld [vmem:[%s0 + $0xe4] sm:$0xf]
  %v73 = vld [vmem:[%s0 + $0xe8] sm:$0xf]
  %v74 = vld [vmem:[%s0 + $0xec] sm:$0xf]
  %v75 = vld [vmem:[%s0 + $0xf0] sm:$0xf]
  %v76 = vld [vmem:[%s0 + $0xf4] sm:$0xf]
  %v77 = vld [vmem:[%s0 + $0xf8] sm:$0xf]
  %v78 = vld [vmem:[%s0 + $0xfc] sm:$0xf]
  %v79 = vld [vmem:[%s0 + $0x100] sm:$0xf]
  %v80 = vld [vmem:[%s0 + $0x104] sm:$0xf]
  %v81 = vld [vmem:[%s0 + $0x108] sm:$0xf]
  %v82 = vld [vmem:[%s0 + $0x10c] sm:$0xf]
  %v83 = vld [vmem:[%s0 + $0x110] sm:$0xf]
  %v84 = vld [vmem:[%s0 + $0x114] sm:$0xf]
  %v85 = vld [vmem:[%s0 + $0x118] sm:$0xf]
  %v86 = vld [vmem:[%s0 + $0x11c] sm:$0xf]
  %v87 = vld [vmem:[%s0 + $0x120] sm:$0xf]
  %v88 = vld [vmem:[%s0 + $0x124] sm:$0xf]
  %v89 = vld [vmem:[%s0 + $0x128] sm:$0xf]
  %v90 = vld [vmem:[%s0 + $0x12c] sm:$0xf]
  %v91 = vld [vmem:[%s0 + $0x130] sm:$0xf]
  %v92 = vld [vmem:[%s0 + $0x134] sm:$0xf]
  %v93 = vld [vmem:[%s0 + $0x138] sm:$0xf]
  %v94 = vld [vmem:[%s0 + $0x13c] sm:$0xf]
  %v95 = vld [vmem:[%s0 + $0x140] sm:$0xf]
  %v96 = vld [vmem:[%s0 + $0x144] sm:$0xf]
  %v97 = vld [vmem:[%s0 + $0x148] sm:$0xf]
  %v98 = vld [vmem:[%s0 + $0x14c] sm:$0xf]
  %v99 = vld [vmem:[%s0 + $0x150] sm:$0xf]
  %v100 = vld [vmem:[%s0 + $0x154] sm:$0xf]
  %v101 = vld [vmem:[%s0 + $0x158] sm:$0xf]
  %v102 = vld [vmem:[%s0 + $0x15c] sm:$0xf]
  %v103 = vld [vmem:[%s0 + $0x160] sm:$0xf]
  %v104 = vld [vmem:[%s0 + $0x164] sm:$0xf]
  %v105 = vld [vmem:[%s0 + $0x168] sm:$0xf]
  %v106 = vld [vmem:[%s0 + $0x16c] sm:$0xf]
  %v107 = vld [vmem:[%s0 + $0x170] sm:$0xf]
  %v108 = vld [vmem:[%s0 + $0x174] sm:$0xf]
  %v109 = vld [vmem:[%s0 + $0x178] sm:$0xf]
  %v110 = vld [vmem:[%s0 + $0x17c] sm:$0xf]
  %v111 = vld [vmem:[%s0 + $0x180] sm:$0xf]
  %v112 = vld [vmem:[%s0 + $0x184] sm:$0xf]
  %v113 = vld [vmem:[%s0 + $0x188] sm:$0xf]
  %v114 = vld [vmem:[%s0 + $0x18c] sm:$0xf]
  %v115 = vld [vmem:[%s0 + $0x190] sm:$0xf]
  %v116 = vld [vmem:[%s0 + $0x194] sm:$0xf]
  %v117 = vld [vmem:[%s0 + $0x198] sm:$0xf]
  %v118 = vld [vmem:[%s0 + $0x19c] sm:$0xf]
  %v119 = vld [vmem:[%s0 + $0x1a0] sm:$0xf]
  %v120 = vld [vmem:[%s0 + $0x1a4] sm:$0xf]
  %v121 = vld [vmem:[%s0 + $0x1a8] sm:$0xf]
  %v122 = vld [vmem:[%s0 + $0x1ac] sm:$0xf]
  %v123 = vld [vmem:[%s0 + $0x1b0] sm:$0xf]
  %v124 = vld [vmem:[%s0 + $0x1b4] sm:$0xf]
  %v125 = vld [vmem:[%s0 + $0x1b8] sm:$0xf]
  %v126 = vld [vmem:[%s0 + $0x1bc] sm:$0xf]
  %v127 = vld [vmem:[%s0 + $0x1c0] sm:$0xf]
  %v128 = vld [vmem:[%s0 + $0x1c4] sm:$0xf]
  %v129 = vld [vmem:[%s0 + $0x1c8] sm:$0xf]
  %v130 = vld [vmem:[%s0 + $0x1cc] sm:$0xf]
  %v131 = vld [vmem:[%s0 + $0x1d0] sm:$0xf]
  %v132 = vld [vmem:[%s0 + $0x1d4] sm:$0xf]
  %v133 = vld [vmem:[%s0 + $0x1d8] sm:$0xf]
  %v134 = vld [vmem:[%s0 + $0x1dc] sm:$0xf]
  %v135 = vld [vmem:[%s0 + $0x1e0] sm:$0xf]
  %v136 = vld [vmem:[%s0 + $0x1e4] sm:$0xf]
  %v137 = vld [vmem:[%s0 + $0x1e8] sm:$0xf]
  %v138 = vld [vmem:[%s0 + $0x1ec] sm:$0xf]
  %v139 = vld [vmem:[%s0 + $0x1f0] sm:$0xf]
  %v140 = vld [vmem:[%s0 + $0x1f4] sm:$0xf]
  %v141 = vld [vmem:[%s0 + $0x1f8] sm:$0xf]
  %v142 = vld [vmem:[%s0 + $0x1fc] sm:$0xf]
  %v143 = vld [vmem:[%s0 + $0x200] sm:$0xf]
  %v144 = vld [vmem:[%s0 + $0x204] sm:$0xf]
  %v145 = vld [vmem:[%s0 + $0x208] sm:$0xf]
  %v146 = vld [vmem:[%s0 + $0x20c] sm:$0xf]
  %v147 = vld [vmem:[%s0 + $0x210] sm:$0xf]
  %v148 = vld [vmem:[%s0 + $0x214] sm:$0xf]
  %v149 = vld [vmem:[%s0 + $0x218] sm:$0xf]
  %v150 = vld [vmem:[%s0 + $0x21c] sm:$0xf]
  %v151 = vld [vmem:[%s0 + $0x220] sm:$0xf]
  %v152 = vld [vmem:[%s0 + $0x224] sm:$0xf]
  %v153 = vld [vmem:[%s0 + $0x228] sm:$0xf]
  %v154 = vld [vmem:[%s0 + $0x22c] sm:$0xf]
  %v155 = vld [vmem:[%s0 + $0x230] sm:$0xf]
  %v156 = vld [vmem:[%s0 + $0x234] sm:$0xf]
  %v157 = vld [vmem:[%s0 + $0x238] sm:$0xf]
  %v158 = vld [vmem:[%s0 + $0x23c] sm:$0xf]
  %v159 = vld [vmem:[%s0 + $0x240] sm:$0xf]
  %v160 = vld [vmem:[%s0 + $0x244] sm:$0xf]
  %v161 = vld [vmem:[%s0 + $0x248] sm:$0xf]
  %v162 = vld [vmem:[%s0 + $0x24c] sm:$0xf]
  %v163 = vld [vmem:[%s0 + $0x250] sm:$0xf]
  %v164 = vld [vmem:[%s0 + $0x254] sm:$0xf]
  %v165 = vld [vmem:[%s0 + $0x258] sm:$0xf]
  %v166 = vld [vmem:[%s0 + $0x25c] sm:$0xf]
  %v167 = vld [vmem:[%s0 + $0x260] sm:$0xf]
  %v168 = vld [vmem:[%s0 + $0x264] sm:$0xf]
  %v169 = vld [vmem:[%s0 + $0x268] sm:$0xf]
  %v170 = vld [vmem:[%s0 + $0x26c] sm:$0xf]
  %v171 = vld [vmem:[%s0 + $0x270] sm:$0xf]
  %v172 = vld [vmem:[%s0 + $0x274] sm:$0xf]
  %v173 = vld [vmem:[%s0 + $0x278] sm:$0xf]
  %v174 = vld [vmem:[%s0 + $0x27c] sm:$0xf]
  %v175 = vld [vmem:[%s0 + $0x280] sm:$0xf]
  %v176 = vld [vmem:[%s0 + $0x284] sm:$0xf]
  %v177 = vld [vmem:[%s0 + $0x288] sm:$0xf]
  %v178 = vld [vmem:[%s0 + $0x28c] sm:$0xf]
  %v179 = vld [vmem:[%s0 + $0x290] sm:$0xf]
  %v180 = vld [vmem:[%s0 + $0x294] sm:$0xf]
  %v181 = vld [vmem:[%s0 + $0x298] sm:$0xf]
  %v182 = vld [vmem:[%s0 + $0x29c] sm:$0xf]
  %v183 = vld [vmem:[%s0 + $0x2a0] sm:$0xf]
  %v184 = vld [vmem:[%s0 + $0x2a4] sm:$0xf]
  %v185 = vld [vmem:[%s0 + $0x2a8] sm:$0xf]
  %v186 = vld [vmem:[%s0 + $0x2ac] sm:$0xf]
  %v187 = vld [vmem:[%s1] sm:$0xf]
  %v188 = vld [vmem:[%s1 + $0x4] sm:$0xf]
  %v189 = vld [vmem:[%s1 + $0x8] sm:$0xf]
  %v190 = vld [vmem:[%s1 + $0xc] sm:$0x1]
  %v363 = vunpack.c.l.b16 %v15
  %v364 = vunpack.c.l.b16 %v16
  %v365 = vunpack.c.l.b16 %v17
  %v366 = vunpack.c.l.b16 %v18
  %v367 = vunpack.c.l.b16 %v19
  %v368 = vunpack.c.l.b16 %v20
  %v369 = vunpack.c.l.b16 %v21
  %v370 = vunpack.c.l.b16 %v22
  %v371 = vunpack.c.l.b16 %v23
  %v372 = vunpack.c.l.b16 %v24
  %v373 = vunpack.c.l.b16 %v25
  %v374 = vunpack.c.l.b16 %v26
  %v375 = vunpack.c.l.b16 %v27
  %v376 = vunpack.c.l.b16 %v28
  %v377 = vunpack.c.l.b16 %v29
  %v378 = vunpack.c.l.b16 %v30
  %v379 = vunpack.c.l.b16 %v31
  %v380 = vunpack.c.l.b16 %v32
  %v381 = vunpack.c.l.b16 %v33
  %v382 = vunpack.c.l.b16 %v34
  %v383 = vunpack.c.l.b16 %v35
  %v384 = vunpack.c.l.b16 %v36
  %v385 = vunpack.c.l.b16 %v37
  %v386 = vunpack.c.l.b16 %v38
  %v387 = vunpack.c.l.b16 %v39
  %v388 = vunpack.c.l.b16 %v40
  %v389 = vunpack.c.l.b16 %v41
  %v390 = vunpack.c.l.b16 %v42
  %v391 = vunpack.c.l.b16 %v43
  %v392 = vunpack.c.l.b16 %v44
  %v393 = vunpack.c.l.b16 %v45
  %v394 = vunpack.c.l.b16 %v46
  %v395 = vunpack.c.l.b16 %v47
  %v396 = vunpack.c.l.b16 %v48
  %v397 = vunpack.c.l.b16 %v49
  %v398 = vunpack.c.l.b16 %v50
  %v399 = vunpack.c.l.b16 %v51
  %v400 = vunpack.c.l.b16 %v52
  %v401 = vunpack.c.l.b16 %v53
  %v402 = vunpack.c.l.b16 %v54
  %v403 = vunpack.c.l.b16 %v55
  %v404 = vunpack.c.l.b16 %v56
  %v405 = vunpack.c.l.b16 %v57
  %v406 = vunpack.c.l.b16 %v58
  %v407 = vunpack.c.l.b16 %v59
  %v408 = vunpack.c.l.b16 %v60
  %v409 = vunpack.c.l.b16 %v61
  %v410 = vunpack.c.l.b16 %v62
  %v411 = vunpack.c.l.b16 %v63
  %v412 = vunpack.c.l.b16 %v64
  %v413 = vunpack.c.l.b16 %v65
  %v414 = vunpack.c.l.b16 %v66
  %v415 = vunpack.c.l.b16 %v67
  %v416 = vunpack.c.l.b16 %v68
  %v417 = vunpack.c.l.b16 %v69
  %v418 = vunpack.c.l.b16 %v70
  %v419 = vunpack.c.l.b16 %v71
  %v420 = vunpack.c.l.b16 %v72
  %v421 = vunpack.c.l.b16 %v73
  %v422 = vunpack.c.l.b16 %v74
  %v423 = vunpack.c.l.b16 %v75
  %v424 = vunpack.c.l.b16 %v76
  %v425 = vunpack.c.l.b16 %v77
  %v426 = vunpack.c.l.b16 %v78
  %v427 = vunpack.c.l.b16 %v79
  %v428 = vunpack.c.l.b16 %v80
  %v429 = vunpack.c.l.b16 %v81
  %v430 = vunpack.c.l.b16 %v82
  %v431 = vunpack.c.l.b16 %v83
  %v432 = vunpack.c.l.b16 %v84
  %v433 = vunpack.c.l.b16 %v85
  %v434 = vunpack.c.l.b16 %v86
  %v435 = vunpack.c.l.b16 %v87
  %v436 = vunpack.c.l.b16 %v88
  %v437 = vunpack.c.l.b16 %v89
  %v438 = vunpack.c.l.b16 %v90
  %v439 = vunpack.c.l.b16 %v91
  %v440 = vunpack.c.l.b16 %v92
  %v441 = vunpack.c.l.b16 %v93
  %v442 = vunpack.c.l.b16 %v94
  %v443 = vunpack.c.l.b16 %v95
  %v444 = vunpack.c.l.b16 %v96
  %v445 = vunpack.c.l.b16 %v97
  %v446 = vunpack.c.l.b16 %v98
  %v447 = vunpack.c.l.b16 %v99
  %v448 = vunpack.c.l.b16 %v100
  %v449 = vunpack.c.l.b16 %v101
  %v450 = vunpack.c.l.b16 %v102
  %v451 = vunpack.c.l.b16 %v103
  %v452 = vunpack.c.l.b16 %v104
  %v453 = vunpack.c.l.b16 %v105
  %v454 = vunpack.c.l.b16 %v106
  %v455 = vunpack.c.l.b16 %v107
  %v456 = vunpack.c.l.b16 %v108
  %v457 = vunpack.c.l.b16 %v109
  %v458 = vunpack.c.l.b16 %v110
  %v459 = vunpack.c.l.b16 %v111
  %v460 = vunpack.c.l.b16 %v112
  %v461 = vunpack.c.l.b16 %v113
  %v462 = vunpack.c.l.b16 %v114
  %v463 = vunpack.c.l.b16 %v115
  %v464 = vunpack.c.l.b16 %v116
  %v465 = vunpack.c.l.b16 %v117
  %v466 = vunpack.c.l.b16 %v118
  %v467 = vunpack.c.l.b16 %v119
  %v468 = vunpack.c.l.b16 %v120
  %v469 = vunpack.c.l.b16 %v121
  %v470 = vunpack.c.l.b16 %v122
  %v471 = vunpack.c.l.b16 %v123
  %v472 = vunpack.c.l.b16 %v124
  %v473 = vunpack.c.l.b16 %v125
  %v474 = vunpack.c.l.b16 %v126
  %v475 = vunpack.c.l.b16 %v127
  %v476 = vunpack.c.l.b16 %v128
  %v477 = vunpack.c.l.b16 %v129
  %v478 = vunpack.c.l.b16 %v130
  %v479 = vunpack.c.l.b16 %v131
  %v480 = vunpack.c.l.b16 %v132
  %v481 = vunpack.c.l.b16 %v133
  %v482 = vunpack.c.l.b16 %v134
  %v483 = vunpack.c.l.b16 %v135
  %v484 = vunpack.c.l.b16 %v136
  %v485 = vunpack.c.l.b16 %v137
  %v486 = vunpack.c.l.b16 %v138
  %v487 = vunpack.c.l.b16 %v139
  %v488 = vunpack.c.l.b16 %v140
  %v489 = vunpack.c.l.b16 %v141
  %v490 = vunpack.c.l.b16 %v142
  %v491 = vunpack.c.l.b16 %v143
  %v492 = vunpack.c.l.b16 %v144
  %v493 = vunpack.c.l.b16 %v145
  %v494 = vunpack.c.l.b16 %v146
  %v495 = vunpack.c.l.b16 %v147
  %v496 = vunpack.c.l.b16 %v148
  %v497 = vunpack.c.l.b16 %v149
  %v498 = vunpack.c.l.b16 %v150
  %v499 = vunpack.c.l.b16 %v151
  %v500 = vunpack.c.l.b16 %v152
  %v501 = vunpack.c.l.b16 %v153
  %v502 = vunpack.c.l.b16 %v154
  %v503 = vunpack.c.l.b16 %v155
  %v504 = vunpack.c.l.b16 %v156
  %v505 = vunpack.c.l.b16 %v157
  %v506 = vunpack.c.l.b16 %v158
  %v507 = vunpack.c.l.b16 %v159
  %v508 = vunpack.c.l.b16 %v160
  %v509 = vunpack.c.l.b16 %v161
  %v510 = vunpack.c.l.b16 %v162
  %v511 = vunpack.c.l.b16 %v163
  %v512 = vunpack.c.l.b16 %v164
  %v513 = vunpack.c.l.b16 %v165
  %v514 = vunpack.c.l.b16 %v166
  %v515 = vunpack.c.l.b16 %v167
  %v516 = vunpack.c.l.b16 %v168
  %v517 = vunpack.c.l.b16 %v169
  %v518 = vunpack.c.l.b16 %v170
  %v519 = vunpack.c.l.b16 %v171
  %v520 = vunpack.c.l.b16 %v172
  %v521 = vunpack.c.l.b16 %v173
  %v522 = vunpack.c.l.b16 %v174
  %v523 = vunpack.c.l.b16 %v175
  %v524 = vunpack.c.l.b16 %v176
  %v525 = vunpack.c.l.b16 %v177
  %v526 = vunpack.c.l.b16 %v178
  %v527 = vunpack.c.l.b16 %v179
  %v528 = vunpack.c.l.b16 %v180
  %v529 = vunpack.c.l.b16 %v181
  %v530 = vunpack.c.l.b16 %v182
  %v531 = vunpack.c.l.b16 %v183
  %v532 = vunpack.c.l.b16 %v184
  %v533 = vunpack.c.l.b16 %v185
  %v534 = vunpack.c.l.b16 %v186
  %v535 = vpack.c.b16 %v364, %v363
  %v536 = vpack.c.b16 %v366, %v365
  %v537 = vpack.c.b16 %v368, %v367
  %v538 = vpack.c.b16 %v370, %v369
  %v539 = vpack.c.b16 %v372, %v371
  %v540 = vpack.c.b16 %v374, %v373
  %v541 = vpack.c.b16 %v376, %v375
  %v542 = vpack.c.b16 %v378, %v377
  %v543 = vpack.c.b16 %v380, %v379
  %v544 = vpack.c.b16 %v382, %v381
  %v545 = vpack.c.b16 %v384, %v383
  %v546 = vpack.c.b16 %v386, %v385
  %v547 = vpack.c.b16 %v388, %v387
  %v548 = vpack.c.b16 %v390, %v389
  %v549 = vpack.c.b16 %v392, %v391
  %v550 = vpack.c.b16 %v394, %v393
  %v551 = vpack.c.b16 %v396, %v395
  %v552 = vpack.c.b16 %v398, %v397
  %v553 = vpack.c.b16 %v400, %v399
  %v554 = vpack.c.b16 %v402, %v401
  %v555 = vpack.c.b16 %v404, %v403
  %v556 = vpack.c.b16 %v406, %v405
  %v557 = vpack.c.b16 %v408, %v407
  %v558 = vpack.c.b16 %v410, %v409
  %v559 = vpack.c.b16 %v412, %v411
  %v560 = vpack.c.b16 %v414, %v413
  %v561 = vpack.c.b16 %v416, %v415
  %v562 = vpack.c.b16 %v418, %v417
  %v563 = vpack.c.b16 %v420, %v419
  %v564 = vpack.c.b16 %v422, %v421
  %v565 = vpack.c.b16 %v424, %v423
  %v566 = vpack.c.b16 %v426, %v425
  %v567 = vpack.c.b16 %v428, %v427
  %v568 = vpack.c.b16 %v430, %v429
  %v569 = vpack.c.b16 %v432, %v431
  %v570 = vpack.c.b16 %v434, %v433
  %v571 = vpack.c.b16 %v436, %v435
  %v572 = vpack.c.b16 %v438, %v437
  %v573 = vpack.c.b16 %v440, %v439
  %v574 = vpack.c.b16 %v442, %v441
  %v575 = vpack.c.b16 %v444, %v443
  %v576 = vpack.c.b16 %v446, %v445
  %v577 = vpack.c.b16 %v448, %v447
  %v578 = vpack.c.b16 %v450, %v449
  %v579 = vpack.c.b16 %v452, %v451
  %v580 = vpack.c.b16 %v454, %v453
  %v581 = vpack.c.b16 %v456, %v455
  %v582 = vpack.c.b16 %v458, %v457
  %v583 = vpack.c.b16 %v460, %v459
  %v584 = vpack.c.b16 %v462, %v461
  %v585 = vpack.c.b16 %v464, %v463
  %v586 = vpack.c.b16 %v466, %v465
  %v587 = vpack.c.b16 %v468, %v467
  %v588 = vpack.c.b16 %v470, %v469
  %v589 = vpack.c.b16 %v472, %v471
  %v590 = vpack.c.b16 %v474, %v473
  %v591 = vpack.c.b16 %v476, %v475
  %v592 = vpack.c.b16 %v478, %v477
  %v593 = vpack.c.b16 %v480, %v479
  %v594 = vpack.c.b16 %v482, %v481
  %v595 = vpack.c.b16 %v484, %v483
  %v596 = vpack.c.b16 %v486, %v485
  %v597 = vpack.c.b16 %v488, %v487
  %v598 = vpack.c.b16 %v490, %v489
  %v599 = vpack.c.b16 %v492, %v491
  %v600 = vpack.c.b16 %v494, %v493
  %v601 = vpack.c.b16 %v496, %v495
  %v602 = vpack.c.b16 %v498, %v497
  %v603 = vpack.c.b16 %v500, %v499
  %v604 = vpack.c.b16 %v502, %v501
  %v605 = vpack.c.b16 %v504, %v503
  %v606 = vpack.c.b16 %v506, %v505
  %v607 = vpack.c.b16 %v508, %v507
  %v608 = vpack.c.b16 %v510, %v509
  %v609 = vpack.c.b16 %v512, %v511
  %v610 = vpack.c.b16 %v514, %v513
  %v611 = vpack.c.b16 %v516, %v515
  %v612 = vpack.c.b16 %v518, %v517
  %v613 = vpack.c.b16 %v520, %v519
  %v614 = vpack.c.b16 %v522, %v521
  %v615 = vpack.c.b16 %v524, %v523
  %v616 = vpack.c.b16 %v526, %v525
  %v617 = vpack.c.b16 %v528, %v527
  %v618 = vpack.c.b16 %v530, %v529
  %v619 = vpack.c.b16 %v532, %v531
  %v620 = vpack.c.b16 %v534, %v533
  %v625 = vunpack.c.l.b16 %v187
  %v626 = vunpack.c.l.b16 %v188
  %v627 = vunpack.c.l.b16 %v189
  %v628 = vunpack.c.l.b16 %v190
  %v629 = vpack.c.b16 %v626, %v625
  %v630 = vpack.c.b16 %v628, %v627
  %vm632 = vcmask 203776
  %v634 = vsel %vm632, %v535, 0
  %v637 = vsel %vm632, %v536, 0
  %v640 = vsel %vm632, %v537, 0
  %v643 = vsel %vm632, %v538, 0
  %v646 = vsel %vm632, %v539, 0
  %v649 = vsel %vm632, %v540, 0
  %v652 = vsel %vm632, %v541, 0
  %v655 = vsel %vm632, %v542, 0
  %v658 = vsel %vm632, %v543, 0
  %v661 = vsel %vm632, %v544, 0
  %v664 = vsel %vm632, %v545, 0
  %v667 = vsel %vm632, %v546, 0
  %v670 = vsel %vm632, %v547, 0
  %v673 = vsel %vm632, %v548, 0
  %v676 = vsel %vm632, %v549, 0
  %v679 = vsel %vm632, %v550, 0
  %v682 = vsel %vm632, %v551, 0
  %v685 = vsel %vm632, %v552, 0
  %v688 = vsel %vm632, %v553, 0
  %v691 = vsel %vm632, %v554, 0
  %v694 = vsel %vm632, %v555, 0
  %v697 = vsel %vm632, %v556, 0
  %v700 = vsel %vm632, %v557, 0
  %v703 = vsel %vm632, %v558, 0
  %v706 = vsel %vm632, %v559, 0
  %v709 = vsel %vm632, %v560, 0
  %v712 = vsel %vm632, %v561, 0
  %v715 = vsel %vm632, %v562, 0
  %v718 = vsel %vm632, %v563, 0
  %v721 = vsel %vm632, %v564, 0
  %v724 = vsel %vm632, %v565, 0
  %v727 = vsel %vm632, %v566, 0
  %v730 = vsel %vm632, %v567, 0
  %v733 = vsel %vm632, %v568, 0
  %v736 = vsel %vm632, %v569, 0
  %v739 = vsel %vm632, %v570, 0
  %v742 = vsel %vm632, %v571, 0
  %v745 = vsel %vm632, %v572, 0
  %v748 = vsel %vm632, %v573, 0
  %v751 = vsel %vm632, %v574, 0
  %v754 = vsel %vm632, %v575, 0
  %v757 = vsel %vm632, %v576, 0
  %v760 = vsel %vm632, %v577, 0
  %v763 = vsel %vm632, %v578, 0
  %v766 = vsel %vm632, %v579, 0
  %v769 = vsel %vm632, %v580, 0
  %v772 = vsel %vm632, %v581, 0
  %v775 = vsel %vm632, %v582, 0
  %v778 = vsel %vm632, %v583, 0
  %v781 = vsel %vm632, %v584, 0
  %v784 = vsel %vm632, %v585, 0
  %v787 = vsel %vm632, %v586, 0
  %v790 = vsel %vm632, %v587, 0
  %v793 = vsel %vm632, %v588, 0
  %v796 = vsel %vm632, %v589, 0
  %v799 = vsel %vm632, %v590, 0
  %v802 = vsel %vm632, %v591, 0
  %v805 = vsel %vm632, %v592, 0
  %v808 = vsel %vm632, %v593, 0
  %v811 = vsel %vm632, %v594, 0
  %v814 = vsel %vm632, %v595, 0
  %v817 = vsel %vm632, %v596, 0
  %v820 = vsel %vm632, %v597, 0
  %v823 = vsel %vm632, %v598, 0
  %v826 = vsel %vm632, %v599, 0
  %v829 = vsel %vm632, %v600, 0
  %v832 = vsel %vm632, %v601, 0
  %v835 = vsel %vm632, %v602, 0
  %v838 = vsel %vm632, %v603, 0
  %v841 = vsel %vm632, %v604, 0
  %v844 = vsel %vm632, %v605, 0
  %v847 = vsel %vm632, %v606, 0
  %v850 = vsel %vm632, %v607, 0
  %v853 = vsel %vm632, %v608, 0
  %v856 = vsel %vm632, %v609, 0
  %v859 = vsel %vm632, %v610, 0
  %v862 = vsel %vm632, %v611, 0
  %v865 = vsel %vm632, %v612, 0
  %v868 = vsel %vm632, %v613, 0
  %v871 = vsel %vm632, %v614, 0
  %v874 = vsel %vm632, %v615, 0
  %v877 = vsel %vm632, %v616, 0
  %v880 = vsel %vm632, %v617, 0
  %v883 = vsel %vm632, %v618, 0
  %v886 = vsel %vm632, %v619, 0
  %v889 = vsel %vm632, %v620, 0
  %vm891 = vcmask 1043456
  %vm892 = vcmask 1044480
  %v893 = vsel %vm891, 4294967295, 65535
  %v894 = vsel %vm892, %v893, 0
  %v896 = vand.u32 %v630, %v894
  %898 = vmatprep.subr.bf16.mxu0 0
  %899 = vmatpush1.bf16.msra.mxu0 %v629
  %900 = vmatprep.subr.bf16.mxu0 0
  %901 = vmatpush1.bf16.msra.mxu0 %v896
  %902 = vmatprep.subr.bf16.mxu0 0
  %903 = vmatpush1.bf16.msra.mxu0 0
  %904 = vmatprep.subr.bf16.mxu0 0
  %905 = vmatpush1.bf16.msra.mxu0 0
  %906 = vmatprep.subr.bf16.mxu0 0
  %907 = vmatpush1.bf16.msra.mxu0 0
  %908 = vmatprep.subr.bf16.mxu0 0
  %909 = vmatpush1.bf16.msra.mxu0 0
  %910 = vmatprep.subr.bf16.mxu0 0
  %911 = vmatpush1.bf16.msra.mxu0 0
  %912 = vmatprep.subr.bf16.mxu0 0
  %913 = vmatpush1.bf16.msra.mxu0 0
  %914 = vmatprep.subr.bf16.mxu0 0
  %915 = vmatpush1.bf16.msra.mxu0 0
  %916 = vmatprep.subr.bf16.mxu0 0
  %917 = vmatpush1.bf16.msra.mxu0 0
  %918 = vmatprep.subr.bf16.mxu0 0
  %919 = vmatpush1.bf16.msra.mxu0 0
  %920 = vmatprep.subr.bf16.mxu0 0
  %921 = vmatpush1.bf16.msra.mxu0 0
  %922 = vmatprep.subr.bf16.mxu0 0
  %923 = vmatpush1.bf16.msra.mxu0 0
  %924 = vmatprep.subr.bf16.mxu0 0
  %925 = vmatpush1.bf16.msra.mxu0 0
  %926 = vmatprep.subr.bf16.mxu0 0
  %927 = vmatpush1.bf16.msra.mxu0 0
  %928 = vmatprep.subr.bf16.mxu0 0
  %929 = vmatpush1.bf16.msra.mxu0 0
  %930 = vmatprep.mubr.bf16.mxu0 0
  %931 = vmatmul.mubr.bf16.gmra.mrb[0].mxu0 %v634
  %v932 = vpop.f32.mrb[0].mxu0
  %v933 = vadd.f32 0.0, %v932
  %v934 = vpop.f32.mrb[0].mxu0
  %v935 = vpop.f32.mrb[0].mxu0
  %v936 = vadd.f32 0.0, %v935
  %v937 = vpop.f32.mrb[0].mxu0
  %938 = vmatprep.mubr.bf16.mxu0 0
  %939 = vmatmul.mubr.bf16.gmra.mrb[0].mxu0 %v637
  %v940 = vpop.f32.mrb[0].mxu0
  %v941 = vadd.f32 0.0, %v940
  %v942 = vpop.f32.mrb[0].mxu0
  %v943 = vpop.f32.mrb[0].mxu0
  %v944 = vadd.f32 0.0, %v943
  %v945 = vpop.f32.mrb[0].mxu0
  %946 = vmatprep.mubr.bf16.mxu0 0
  %947 = vmatmul.mubr.bf16.gmra.mrb[0].mxu0 %v640
  %v948 = vpop.f32.mrb[0].mxu0
  %v949 = vadd.f32 0.0, %v948
  %v950 = vpop.f32.mrb[0].mxu0
  %v951 = vpop.f32.mrb[0].mxu0
  %v952 = vadd.f32 0.0, %v951
  %v953 = vpop.f32.mrb[0].mxu0
  %954 = vmatprep.mubr.bf16.mxu0 0
  %955 = vmatmul.mubr.bf16.gmra.mrb[0].mxu0 %v643
  %v956 = vpop.f32.mrb[0].mxu0
  %v957 = vadd.f32 0.0, %v956
  %v958 = vpop.f32.mrb[0].mxu0
  %v959 = vpop.f32.mrb[0].mxu0
  %v960 = vadd.f32 0.0, %v959
  %v961 = vpop.f32.mrb[0].mxu0
  %962 = vmatprep.mubr.bf16.mxu0 0
  %963 = vmatmul.mubr.bf16.gmra.mrb[0].mxu0 %v646
  %v964 = vpop.f32.mrb[0].mxu0
  %v965 = vadd.f32 0.0, %v964
  %v966 = vpop.f32.mrb[0].mxu0
  %v967 = vpop.f32.mrb[0].mxu0
  %v968 = vadd.f32 0.0, %v967
  %v969 = vpop.f32.mrb[0].mxu0
  %970 = vmatprep.mubr.bf16.mxu0 0
  %971 = vmatmul.mubr.bf16.gmra.mrb[0].mxu0 %v649
  %v972 = vpop.f32.mrb[0].mxu0
  %v973 = vadd.f32 0.0, %v972
  %v974 = vpop.f32.mrb[0].mxu0
  %v975 = vpop.f32.mrb[0].mxu0
  %v976 = vadd.f32 0.0, %v975
  %v977 = vpop.f32.mrb[0].mxu0
  %978 = vmatprep.mubr.bf16.mxu0 0
  %979 = vmatmul.mubr.bf16.gmra.mrb[0].mxu0 %v652
  %v980 = vpop.f32.mrb[0].mxu0
  %v981 = vadd.f32 0.0, %v980
  %v982 = vpop.f32.mrb[0].mxu0
  %v983 = vpop.f32.mrb[0].mxu0
  %v984 = vadd.f32 0.0, %v983
  %v985 = vpop.f32.mrb[0].mxu0
  %986 = vmatprep.mubr.bf16.mxu0 0
  %987 = vmatmul.mubr.bf16.gmra.mrb[0].mxu0 %v655
  %v988 = vpop.f32.mrb[0].mxu0
  %v989 = vadd.f32 0.0, %v988
  %v990 = vpop.f32.mrb[0].mxu0
  %v991 = vpop.f32.mrb[0].mxu0
  %v992 = vadd.f32 0.0, %v991
  %v993 = vpop.f32.mrb[0].mxu0
  %994 = vmatprep.mubr.bf16.mxu0 0
  %995 = vmatmul.mubr.bf16.gmra.mrb[0].mxu0 %v658
  %v996 = vpop.f32.mrb[0].mxu0
  %v997 = vadd.f32 0.0, %v996
  %v998 = vpop.f32.mrb[0].mxu0
  %v999 = vpop.f32.mrb[0].mxu0
  %v1000 = vadd.f32 0.0, %v999
  %v1001 = vpop.f32.mrb[0].mxu0
  %1002 = vmatprep.mubr.bf16.mxu0 0
  %1003 = vmatmul.mubr.bf16.gmra.mrb[0].mxu0 %v661
  %v1004 = vpop.f32.mrb[0].mxu0
  %v1005 = vadd.f32 0.0, %v1004
  %v1006 = vpop.f32.mrb[0].mxu0
  %v1007 = vpop.f32.mrb[0].mxu0
  %v1008 = vadd.f32 0.0, %v1007
  %v1009 = vpop.f32.mrb[0].mxu0
  %1010 = vmatprep.mubr.bf16.mxu0 0
  %1011 = vmatmul.mubr.bf16.gmra.mrb[0].mxu0 %v664
  %v1012 = vpop.f32.mrb[0].mxu0
  %v1013 = vadd.f32 0.0, %v1012
  %v1014 = vpop.f32.mrb[0].mxu0
  %v1015 = vpop.f32.mrb[0].mxu0
  %v1016 = vadd.f32 0.0, %v1015
  %v1017 = vpop.f32.mrb[0].mxu0
  %1018 = vmatprep.mubr.bf16.mxu0 0
  %1019 = vmatmul.mubr.bf16.gmra.mrb[0].mxu0 %v667
  %v1020 = vpop.f32.mrb[0].mxu0
  %v1021 = vadd.f32 0.0, %v1020
  %v1022 = vpop.f32.mrb[0].mxu0
  %v1023 = vpop.f32.mrb[0].mxu0
  %v1024 = vadd.f32 0.0, %v1023
  %v1025 = vpop.f32.mrb[0].mxu0
  %1026 = vmatprep.mubr.bf16.mxu0 0
  %1027 = vmatmul.mubr.bf16.gmra.mrb[0].mxu0 %v670
  %v1028 = vpop.f32.mrb[0].mxu0
  %v1029 = vadd.f32 0.0, %v1028
  %v1030 = vpop.f32.mrb[0].mxu0
  %v1031 = vpop.f32.mrb[0].mxu0
  %v1032 = vadd.f32 0.0, %v1031
  %v1033 = vpop.f32.mrb[0].mxu0
  %1034 = vmatprep.mubr.bf16.mxu0 0
  %1035 = vmatmul.mubr.bf16.gmra.mrb[0].mxu0 %v673
  %v1036 = vpop.f32.mrb[0].mxu0
  %v1037 = vadd.f32 0.0, %v1036
  %v1038 = vpop.f32.mrb[0].mxu0
  %v1039 = vpop.f32.mrb[0].mxu0
  %v1040 = vadd.f32 0.0, %v1039
  %v1041 = vpop.f32.mrb[0].mxu0
  %1042 = vmatprep.mubr.bf16.mxu0 0
  %1043 = vmatmul.mubr.bf16.gmra.mrb[0].mxu0 %v676
  %v1044 = vpop.f32.mrb[0].mxu0
  %v1045 = vadd.f32 0.0, %v1044
  %v1046 = vpop.f32.mrb[0].mxu0
  %v1047 = vpop.f32.mrb[0].mxu0
  %v1048 = vadd.f32 0.0, %v1047
  %v1049 = vpop.f32.mrb[0].mxu0
  %1050 = vmatprep.mubr.bf16.mxu0 0
  %1051 = vmatmul.mubr.bf16.gmra.mrb[0].mxu0 %v679
  %v1052 = vpop.f32.mrb[0].mxu0
  %v1053 = vadd.f32 0.0, %v1052
  %v1054 = vpop.f32.mrb[0].mxu0
  %v1055 = vpop.f32.mrb[0].mxu0
  %v1056 = vadd.f32 0.0, %v1055
  %v1057 = vpop.f32.mrb[0].mxu0
  %1058 = vmatprep.mubr.bf16.mxu0 0
  %1059 = vmatmul.mubr.bf16.gmra.mrb[0].mxu0 %v682
  %v1060 = vpop.f32.mrb[0].mxu0
  %v1061 = vadd.f32 0.0, %v1060
  %v1062 = vpop.f32.mrb[0].mxu0
  %v1063 = vpop.f32.mrb[0].mxu0
  %v1064 = vadd.f32 0.0, %v1063
  %v1065 = vpop.f32.mrb[0].mxu0
  %1066 = vmatprep.mubr.bf16.mxu0 0
  %1067 = vmatmul.mubr.bf16.gmra.mrb[0].mxu0 %v685
  %v1068 = vpop.f32.mrb[0].mxu0
  %v1069 = vadd.f32 0.0, %v1068
  %v1070 = vpop.f32.mrb[0].mxu0
  %v1071 = vpop.f32.mrb[0].mxu0
  %v1072 = vadd.f32 0.0, %v1071
  %v1073 = vpop.f32.mrb[0].mxu0
  %1074 = vmatprep.mubr.bf16.mxu0 0
  %1075 = vmatmul.mubr.bf16.gmra.mrb[0].mxu0 %v688
  %v1076 = vpop.f32.mrb[0].mxu0
  %v1077 = vadd.f32 0.0, %v1076
  %v1078 = vpop.f32.mrb[0].mxu0
  %v1079 = vpop.f32.mrb[0].mxu0
  %v1080 = vadd.f32 0.0, %v1079
  %v1081 = vpop.f32.mrb[0].mxu0
  %1082 = vmatprep.mubr.bf16.mxu0 0
  %1083 = vmatmul.mubr.bf16.gmra.mrb[0].mxu0 %v691
  %v1084 = vpop.f32.mrb[0].mxu0
  %v1085 = vadd.f32 0.0, %v1084
  %v1086 = vpop.f32.mrb[0].mxu0
  %v1087 = vpop.f32.mrb[0].mxu0
  %v1088 = vadd.f32 0.0, %v1087
  %v1089 = vpop.f32.mrb[0].mxu0
  %1090 = vmatprep.mubr.bf16.mxu0 0
  %1091 = vmatmul.mubr.bf16.gmra.mrb[0].mxu0 %v694
  %v1092 = vpop.f32.mrb[0].mxu0
  %v1093 = vadd.f32 0.0, %v1092
  %v1094 = vpop.f32.mrb[0].mxu0
  %v1095 = vpop.f32.mrb[0].mxu0
  %v1096 = vadd.f32 0.0, %v1095
  %v1097 = vpop.f32.mrb[0].mxu0
  %1098 = vmatprep.mubr.bf16.mxu0 0
  %1099 = vmatmul.mubr.bf16.gmra.mrb[0].mxu0 %v697
  %v1100 = vpop.f32.mrb[0].mxu0
  %v1101 = vadd.f32 0.0, %v1100
  %v1102 = vpop.f32.mrb[0].mxu0
  %v1103 = vpop.f32.mrb[0].mxu0
  %v1104 = vadd.f32 0.0, %v1103
  %v1105 = vpop.f32.mrb[0].mxu0
  %1106 = vmatprep.mubr.bf16.mxu0 0
  %1107 = vmatmul.mubr.bf16.gmra.mrb[0].mxu0 %v700
  %v1108 = vpop.f32.mrb[0].mxu0
  %v1109 = vadd.f32 0.0, %v1108
  %v1110 = vpop.f32.mrb[0].mxu0
  %v1111 = vpop.f32.mrb[0].mxu0
  %v1112 = vadd.f32 0.0, %v1111
  %v1113 = vpop.f32.mrb[0].mxu0
  %1114 = vmatprep.mubr.bf16.mxu0 0
  %1115 = vmatmul.mubr.bf16.gmra.mrb[0].mxu0 %v703
  %v1116 = vpop.f32.mrb[0].mxu0
  %v1117 = vadd.f32 0.0, %v1116
  %v1118 = vpop.f32.mrb[0].mxu0
  %v1119 = vpop.f32.mrb[0].mxu0
  %v1120 = vadd.f32 0.0, %v1119
  %v1121 = vpop.f32.mrb[0].mxu0
  %1122 = vmatprep.mubr.bf16.mxu0 0
  %1123 = vmatmul.mubr.bf16.gmra.mrb[0].mxu0 %v706
  %v1124 = vpop.f32.mrb[0].mxu0
  %v1125 = vadd.f32 0.0, %v1124
  %v1126 = vpop.f32.mrb[0].mxu0
  %v1127 = vpop.f32.mrb[0].mxu0
  %v1128 = vadd.f32 0.0, %v1127
  %v1129 = vpop.f32.mrb[0].mxu0
  %1130 = vmatprep.mubr.bf16.mxu0 0
  %1131 = vmatmul.mubr.bf16.gmra.mrb[0].mxu0 %v709
  %v1132 = vpop.f32.mrb[0].mxu0
  %v1133 = vadd.f32 0.0, %v1132
  %v1134 = vpop.f32.mrb[0].mxu0
  %v1135 = vpop.f32.mrb[0].mxu0
  %v1136 = vadd.f32 0.0, %v1135
  %v1137 = vpop.f32.mrb[0].mxu0
  %1138 = vmatprep.mubr.bf16.mxu0 0
  %1139 = vmatmul.mubr.bf16.gmra.mrb[0].mxu0 %v712
  %v1140 = vpop.f32.mrb[0].mxu0
  %v1141 = vadd.f32 0.0, %v1140
  %v1142 = vpop.f32.mrb[0].mxu0
  %v1143 = vpop.f32.mrb[0].mxu0
  %v1144 = vadd.f32 0.0, %v1143
  %v1145 = vpop.f32.mrb[0].mxu0
  %1146 = vmatprep.mubr.bf16.mxu0 0
  %1147 = vmatmul.mubr.bf16.gmra.mrb[0].mxu0 %v715
  %v1148 = vpop.f32.mrb[0].mxu0
  %v1149 = vadd.f32 0.0, %v1148
  %v1150 = vpop.f32.mrb[0].mxu0
  %v1151 = vpop.f32.mrb[0].mxu0
  %v1152 = vadd.f32 0.0, %v1151
  %v1153 = vpop.f32.mrb[0].mxu0
  %1154 = vmatprep.mubr.bf16.mxu0 0
  %1155 = vmatmul.mubr.bf16.gmra.mrb[0].mxu0 %v718
  %v1156 = vpop.f32.mrb[0].mxu0
  %v1157 = vadd.f32 0.0, %v1156
  %v1158 = vpop.f32.mrb[0].mxu0
  %v1159 = vpop.f32.mrb[0].mxu0
  %v1160 = vadd.f32 0.0, %v1159
  %v1161 = vpop.f32.mrb[0].mxu0
  %1162 = vmatprep.mubr.bf16.mxu0 0
  %1163 = vmatmul.mubr.bf16.gmra.mrb[0].mxu0 %v721
  %v1164 = vpop.f32.mrb[0].mxu0
  %v1165 = vadd.f32 0.0, %v1164
  %v1166 = vpop.f32.mrb[0].mxu0
  %v1167 = vpop.f32.mrb[0].mxu0
  %v1168 = vadd.f32 0.0, %v1167
  %v1169 = vpop.f32.mrb[0].mxu0
  %1170 = vmatprep.mubr.bf16.mxu0 0
  %1171 = vmatmul.mubr.bf16.gmra.mrb[0].mxu0 %v724
  %v1172 = vpop.f32.mrb[0].mxu0
  %v1173 = vadd.f32 0.0, %v1172
  %v1174 = vpop.f32.mrb[0].mxu0
  %v1175 = vpop.f32.mrb[0].mxu0
  %v1176 = vadd.f32 0.0, %v1175
  %v1177 = vpop.f32.mrb[0].mxu0
  %1178 = vmatprep.mubr.bf16.mxu0 0
  %1179 = vmatmul.mubr.bf16.gmra.mrb[0].mxu0 %v727
  %v1180 = vpop.f32.mrb[0].mxu0
  %v1181 = vadd.f32 0.0, %v1180
  %v1182 = vpop.f32.mrb[0].mxu0
  %v1183 = vpop.f32.mrb[0].mxu0
  %v1184 = vadd.f32 0.0, %v1183
  %v1185 = vpop.f32.mrb[0].mxu0
  %1186 = vmatprep.mubr.bf16.mxu0 0
  %1187 = vmatmul.mubr.bf16.gmra.mrb[0].mxu0 %v730
  %v1188 = vpop.f32.mrb[0].mxu0
  %v1189 = vadd.f32 0.0, %v1188
  %v1190 = vpop.f32.mrb[0].mxu0
  %v1191 = vpop.f32.mrb[0].mxu0
  %v1192 = vadd.f32 0.0, %v1191
  %v1193 = vpop.f32.mrb[0].mxu0
  %1194 = vmatprep.mubr.bf16.mxu0 0
  %1195 = vmatmul.mubr.bf16.gmra.mrb[0].mxu0 %v733
  %v1196 = vpop.f32.mrb[0].mxu0
  %v1197 = vadd.f32 0.0, %v1196
  %v1198 = vpop.f32.mrb[0].mxu0
  %v1199 = vpop.f32.mrb[0].mxu0
  %v1200 = vadd.f32 0.0, %v1199
  %v1201 = vpop.f32.mrb[0].mxu0
  %1202 = vmatprep.mubr.bf16.mxu0 0
  %1203 = vmatmul.mubr.bf16.gmra.mrb[0].mxu0 %v736
  %v1204 = vpop.f32.mrb[0].mxu0
  %v1205 = vadd.f32 0.0, %v1204
  %v1206 = vpop.f32.mrb[0].mxu0
  %v1207 = vpop.f32.mrb[0].mxu0
  %v1208 = vadd.f32 0.0, %v1207
  %v1209 = vpop.f32.mrb[0].mxu0
  %1210 = vmatprep.mubr.bf16.mxu0 0
  %1211 = vmatmul.mubr.bf16.gmra.mrb[0].mxu0 %v739
  %v1212 = vpop.f32.mrb[0].mxu0
  %v1213 = vadd.f32 0.0, %v1212
  %v1214 = vpop.f32.mrb[0].mxu0
  %v1215 = vpop.f32.mrb[0].mxu0
  %v1216 = vadd.f32 0.0, %v1215
  %v1217 = vpop.f32.mrb[0].mxu0
  %1218 = vmatprep.mubr.bf16.mxu0 0
  %1219 = vmatmul.mubr.bf16.gmra.mrb[0].mxu0 %v742
  %v1220 = vpop.f32.mrb[0].mxu0
  %v1221 = vadd.f32 0.0, %v1220
  %v1222 = vpop.f32.mrb[0].mxu0
  %v1223 = vpop.f32.mrb[0].mxu0
  %v1224 = vadd.f32 0.0, %v1223
  %v1225 = vpop.f32.mrb[0].mxu0
  %1226 = vmatprep.mubr.bf16.mxu0 0
  %1227 = vmatmul.mubr.bf16.gmra.mrb[0].mxu0 %v745
  %v1228 = vpop.f32.mrb[0].mxu0
  %v1229 = vadd.f32 0.0, %v1228
  %v1230 = vpop.f32.mrb[0].mxu0
  %v1231 = vpop.f32.mrb[0].mxu0
  %v1232 = vadd.f32 0.0, %v1231
  %v1233 = vpop.f32.mrb[0].mxu0
  %1234 = vmatprep.mubr.bf16.mxu0 0
  %1235 = vmatmul.mubr.bf16.gmra.mrb[0].mxu0 %v748
  %v1236 = vpop.f32.mrb[0].mxu0
  %v1237 = vadd.f32 0.0, %v1236
  %v1238 = vpop.f32.mrb[0].mxu0
  %v1239 = vpop.f32.mrb[0].mxu0
  %v1240 = vadd.f32 0.0, %v1239
  %v1241 = vpop.f32.mrb[0].mxu0
  %1242 = vmatprep.mubr.bf16.mxu0 0
  %1243 = vmatmul.mubr.bf16.gmra.mrb[0].mxu0 %v751
  %v1244 = vpop.f32.mrb[0].mxu0
  %v1245 = vadd.f32 0.0, %v1244
  %v1246 = vpop.f32.mrb[0].mxu0
  %v1247 = vpop.f32.mrb[0].mxu0
  %v1248 = vadd.f32 0.0, %v1247
  %v1249 = vpop.f32.mrb[0].mxu0
  %1250 = vmatprep.mubr.bf16.mxu0 0
  %1251 = vmatmul.mubr.bf16.gmra.mrb[0].mxu0 %v754
  %v1252 = vpop.f32.mrb[0].mxu0
  %v1253 = vadd.f32 0.0, %v1252
  %v1254 = vpop.f32.mrb[0].mxu0
  %v1255 = vpop.f32.mrb[0].mxu0
  %v1256 = vadd.f32 0.0, %v1255
  %v1257 = vpop.f32.mrb[0].mxu0
  %1258 = vmatprep.mubr.bf16.mxu0 0
  %1259 = vmatmul.mubr.bf16.gmra.mrb[0].mxu0 %v757
  %v1260 = vpop.f32.mrb[0].mxu0
  %v1261 = vadd.f32 0.0, %v1260
  %v1262 = vpop.f32.mrb[0].mxu0
  %v1263 = vpop.f32.mrb[0].mxu0
  %v1264 = vadd.f32 0.0, %v1263
  %v1265 = vpop.f32.mrb[0].mxu0
  %1266 = vmatprep.mubr.bf16.mxu0 0
  %1267 = vmatmul.mubr.bf16.gmra.mrb[0].mxu0 %v760
  %v1268 = vpop.f32.mrb[0].mxu0
  %v1269 = vadd.f32 0.0, %v1268
  %v1270 = vpop.f32.mrb[0].mxu0
  %v1271 = vpop.f32.mrb[0].mxu0
  %v1272 = vadd.f32 0.0, %v1271
  %v1273 = vpop.f32.mrb[0].mxu0
  %1274 = vmatprep.mubr.bf16.mxu0 0
  %1275 = vmatmul.mubr.bf16.gmra.mrb[0].mxu0 %v763
  %v1276 = vpop.f32.mrb[0].mxu0
  %v1277 = vadd.f32 0.0, %v1276
  %v1278 = vpop.f32.mrb[0].mxu0
  %v1279 = vpop.f32.mrb[0].mxu0
  %v1280 = vadd.f32 0.0, %v1279
  %v1281 = vpop.f32.mrb[0].mxu0
  %1282 = vmatprep.mubr.bf16.mxu0 0
  %1283 = vmatmul.mubr.bf16.gmra.mrb[0].mxu0 %v766
  %v1284 = vpop.f32.mrb[0].mxu0
  %v1285 = vadd.f32 0.0, %v1284
  %v1286 = vpop.f32.mrb[0].mxu0
  %v1287 = vpop.f32.mrb[0].mxu0
  %v1288 = vadd.f32 0.0, %v1287
  %v1289 = vpop.f32.mrb[0].mxu0
  %1290 = vmatprep.mubr.bf16.mxu0 0
  %1291 = vmatmul.mubr.bf16.gmra.mrb[0].mxu0 %v769
  %v1292 = vpop.f32.mrb[0].mxu0
  %v1293 = vadd.f32 0.0, %v1292
  %v1294 = vpop.f32.mrb[0].mxu0
  %v1295 = vpop.f32.mrb[0].mxu0
  %v1296 = vadd.f32 0.0, %v1295
  %v1297 = vpop.f32.mrb[0].mxu0
  %1298 = vmatprep.mubr.bf16.mxu0 0
  %1299 = vmatmul.mubr.bf16.gmra.mrb[0].mxu0 %v772
  %v1300 = vpop.f32.mrb[0].mxu0
  %v1301 = vadd.f32 0.0, %v1300
  %v1302 = vpop.f32.mrb[0].mxu0
  %v1303 = vpop.f32.mrb[0].mxu0
  %v1304 = vadd.f32 0.0, %v1303
  %v1305 = vpop.f32.mrb[0].mxu0
  %1306 = vmatprep.mubr.bf16.mxu0 0
  %1307 = vmatmul.mubr.bf16.gmra.mrb[0].mxu0 %v775
  %v1308 = vpop.f32.mrb[0].mxu0
  %v1309 = vadd.f32 0.0, %v1308
  %v1310 = vpop.f32.mrb[0].mxu0
  %v1311 = vpop.f32.mrb[0].mxu0
  %v1312 = vadd.f32 0.0, %v1311
  %v1313 = vpop.f32.mrb[0].mxu0
  %1314 = vmatprep.mubr.bf16.mxu0 0
  %1315 = vmatmul.mubr.bf16.gmra.mrb[0].mxu0 %v778
  %v1316 = vpop.f32.mrb[0].mxu0
  %v1317 = vadd.f32 0.0, %v1316
  %v1318 = vpop.f32.mrb[0].mxu0
  %v1319 = vpop.f32.mrb[0].mxu0
  %v1320 = vadd.f32 0.0, %v1319
  %v1321 = vpop.f32.mrb[0].mxu0
  %1322 = vmatprep.mubr.bf16.mxu0 0
  %1323 = vmatmul.mubr.bf16.gmra.mrb[0].mxu0 %v781
  %v1324 = vpop.f32.mrb[0].mxu0
  %v1325 = vadd.f32 0.0, %v1324
  %v1326 = vpop.f32.mrb[0].mxu0
  %v1327 = vpop.f32.mrb[0].mxu0
  %v1328 = vadd.f32 0.0, %v1327
  %v1329 = vpop.f32.mrb[0].mxu0
  %1330 = vmatprep.mubr.bf16.mxu0 0
  %1331 = vmatmul.mubr.bf16.gmra.mrb[0].mxu0 %v784
  %v1332 = vpop.f32.mrb[0].mxu0
  %v1333 = vadd.f32 0.0, %v1332
  %v1334 = vpop.f32.mrb[0].mxu0
  %v1335 = vpop.f32.mrb[0].mxu0
  %v1336 = vadd.f32 0.0, %v1335
  %v1337 = vpop.f32.mrb[0].mxu0
  %1338 = vmatprep.mubr.bf16.mxu0 0
  %1339 = vmatmul.mubr.bf16.gmra.mrb[0].mxu0 %v787
  %v1340 = vpop.f32.mrb[0].mxu0
  %v1341 = vadd.f32 0.0, %v1340
  %v1342 = vpop.f32.mrb[0].mxu0
  %v1343 = vpop.f32.mrb[0].mxu0
  %v1344 = vadd.f32 0.0, %v1343
  %v1345 = vpop.f32.mrb[0].mxu0
  %1346 = vmatprep.mubr.bf16.mxu0 0
  %1347 = vmatmul.mubr.bf16.gmra.mrb[0].mxu0 %v790
  %v1348 = vpop.f32.mrb[0].mxu0
  %v1349 = vadd.f32 0.0, %v1348
  %v1350 = vpop.f32.mrb[0].mxu0
  %v1351 = vpop.f32.mrb[0].mxu0
  %v1352 = vadd.f32 0.0, %v1351
  %v1353 = vpop.f32.mrb[0].mxu0
  %1354 = vmatprep.mubr.bf16.mxu0 0
  %1355 = vmatmul.mubr.bf16.gmra.mrb[0].mxu0 %v793
  %v1356 = vpop.f32.mrb[0].mxu0
  %v1357 = vadd.f32 0.0, %v1356
  %v1358 = vpop.f32.mrb[0].mxu0
  %v1359 = vpop.f32.mrb[0].mxu0
  %v1360 = vadd.f32 0.0, %v1359
  %v1361 = vpop.f32.mrb[0].mxu0
  %1362 = vmatprep.mubr.bf16.mxu0 0
  %1363 = vmatmul.mubr.bf16.gmra.mrb[0].mxu0 %v796
  %v1364 = vpop.f32.mrb[0].mxu0
  %v1365 = vadd.f32 0.0, %v1364
  %v1366 = vpop.f32.mrb[0].mxu0
  %v1367 = vpop.f32.mrb[0].mxu0
  %v1368 = vadd.f32 0.0, %v1367
  %v1369 = vpop.f32.mrb[0].mxu0
  %1370 = vmatprep.mubr.bf16.mxu0 0
  %1371 = vmatmul.mubr.bf16.gmra.mrb[0].mxu0 %v799
  %v1372 = vpop.f32.mrb[0].mxu0
  %v1373 = vadd.f32 0.0, %v1372
  %v1374 = vpop.f32.mrb[0].mxu0
  %v1375 = vpop.f32.mrb[0].mxu0
  %v1376 = vadd.f32 0.0, %v1375
  %v1377 = vpop.f32.mrb[0].mxu0
  %1378 = vmatprep.mubr.bf16.mxu0 0
  %1379 = vmatmul.mubr.bf16.gmra.mrb[0].mxu0 %v802
  %v1380 = vpop.f32.mrb[0].mxu0
  %v1381 = vadd.f32 0.0, %v1380
  %v1382 = vpop.f32.mrb[0].mxu0
  %v1383 = vpop.f32.mrb[0].mxu0
  %v1384 = vadd.f32 0.0, %v1383
  %v1385 = vpop.f32.mrb[0].mxu0
  %1386 = vmatprep.mubr.bf16.mxu0 0
  %1387 = vmatmul.mubr.bf16.gmra.mrb[0].mxu0 %v805
  %v1388 = vpop.f32.mrb[0].mxu0
  %v1389 = vadd.f32 0.0, %v1388
  %v1390 = vpop.f32.mrb[0].mxu0
  %v1391 = vpop.f32.mrb[0].mxu0
  %v1392 = vadd.f32 0.0, %v1391
  %v1393 = vpop.f32.mrb[0].mxu0
  %1394 = vmatprep.mubr.bf16.mxu0 0
  %1395 = vmatmul.mubr.bf16.gmra.mrb[0].mxu0 %v808
  %v1396 = vpop.f32.mrb[0].mxu0
  %v1397 = vadd.f32 0.0, %v1396
  %v1398 = vpop.f32.mrb[0].mxu0
  %v1399 = vpop.f32.mrb[0].mxu0
  %v1400 = vadd.f32 0.0, %v1399
  %v1401 = vpop.f32.mrb[0].mxu0
  %1402 = vmatprep.mubr.bf16.mxu0 0
  %1403 = vmatmul.mubr.bf16.gmra.mrb[0].mxu0 %v811
  %v1404 = vpop.f32.mrb[0].mxu0
  %v1405 = vadd.f32 0.0, %v1404
  %v1406 = vpop.f32.mrb[0].mxu0
  %v1407 = vpop.f32.mrb[0].mxu0
  %v1408 = vadd.f32 0.0, %v1407
  %v1409 = vpop.f32.mrb[0].mxu0
  %1410 = vmatprep.mubr.bf16.mxu0 0
  %1411 = vmatmul.mubr.bf16.gmra.mrb[0].mxu0 %v814
  %v1412 = vpop.f32.mrb[0].mxu0
  %v1413 = vadd.f32 0.0, %v1412
  %v1414 = vpop.f32.mrb[0].mxu0
  %v1415 = vpop.f32.mrb[0].mxu0
  %v1416 = vadd.f32 0.0, %v1415
  %v1417 = vpop.f32.mrb[0].mxu0
  %1418 = vmatprep.mubr.bf16.mxu0 0
  %1419 = vmatmul.mubr.bf16.gmra.mrb[0].mxu0 %v817
  %v1420 = vpop.f32.mrb[0].mxu0
  %v1421 = vadd.f32 0.0, %v1420
  %v1422 = vpop.f32.mrb[0].mxu0
  %v1423 = vpop.f32.mrb[0].mxu0
  %v1424 = vadd.f32 0.0, %v1423
  %v1425 = vpop.f32.mrb[0].mxu0
  %1426 = vmatprep.mubr.bf16.mxu0 0
  %1427 = vmatmul.mubr.bf16.gmra.mrb[0].mxu0 %v820
  %v1428 = vpop.f32.mrb[0].mxu0
  %v1429 = vadd.f32 0.0, %v1428
  %v1430 = vpop.f32.mrb[0].mxu0
  %v1431 = vpop.f32.mrb[0].mxu0
  %v1432 = vadd.f32 0.0, %v1431
  %v1433 = vpop.f32.mrb[0].mxu0
  %1434 = vmatprep.mubr.bf16.mxu0 0
  %1435 = vmatmul.mubr.bf16.gmra.mrb[0].mxu0 %v823
  %v1436 = vpop.f32.mrb[0].mxu0
  %v1437 = vadd.f32 0.0, %v1436
  %v1438 = vpop.f32.mrb[0].mxu0
  %v1439 = vpop.f32.mrb[0].mxu0
  %v1440 = vadd.f32 0.0, %v1439
  %v1441 = vpop.f32.mrb[0].mxu0
  %1442 = vmatprep.mubr.bf16.mxu0 0
  %1443 = vmatmul.mubr.bf16.gmra.mrb[0].mxu0 %v826
  %v1444 = vpop.f32.mrb[0].mxu0
  %v1445 = vadd.f32 0.0, %v1444
  %v1446 = vpop.f32.mrb[0].mxu0
  %v1447 = vpop.f32.mrb[0].mxu0
  %v1448 = vadd.f32 0.0, %v1447
  %v1449 = vpop.f32.mrb[0].mxu0
  %1450 = vmatprep.mubr.bf16.mxu0 0
  %1451 = vmatmul.mubr.bf16.gmra.mrb[0].mxu0 %v829
  %v1452 = vpop.f32.mrb[0].mxu0
  %v1453 = vadd.f32 0.0, %v1452
  %v1454 = vpop.f32.mrb[0].mxu0
  %v1455 = vpop.f32.mrb[0].mxu0
  %v1456 = vadd.f32 0.0, %v1455
  %v1457 = vpop.f32.mrb[0].mxu0
  %1458 = vmatprep.mubr.bf16.mxu0 0
  %1459 = vmatmul.mubr.bf16.gmra.mrb[0].mxu0 %v832
  %v1460 = vpop.f32.mrb[0].mxu0
  %v1461 = vadd.f32 0.0, %v1460
  %v1462 = vpop.f32.mrb[0].mxu0
  %v1463 = vpop.f32.mrb[0].mxu0
  %v1464 = vadd.f32 0.0, %v1463
  %v1465 = vpop.f32.mrb[0].mxu0
  %1466 = vmatprep.mubr.bf16.mxu0 0
  %1467 = vmatmul.mubr.bf16.gmra.mrb[0].mxu0 %v835
  %v1468 = vpop.f32.mrb[0].mxu0
  %v1469 = vadd.f32 0.0, %v1468
  %v1470 = vpop.f32.mrb[0].mxu0
  %v1471 = vpop.f32.mrb[0].mxu0
  %v1472 = vadd.f32 0.0, %v1471
  %v1473 = vpop.f32.mrb[0].mxu0
  %1474 = vmatprep.mubr.bf16.mxu0 0
  %1475 = vmatmul.mubr.bf16.gmra.mrb[0].mxu0 %v838
  %v1476 = vpop.f32.mrb[0].mxu0
  %v1477 = vadd.f32 0.0, %v1476
  %v1478 = vpop.f32.mrb[0].mxu0
  %v1479 = vpop.f32.mrb[0].mxu0
  %v1480 = vadd.f32 0.0, %v1479
  %v1481 = vpop.f32.mrb[0].mxu0
  %1482 = vmatprep.mubr.bf16.mxu0 0
  %1483 = vmatmul.mubr.bf16.gmra.mrb[0].mxu0 %v841
  %v1484 = vpop.f32.mrb[0].mxu0
  %v1485 = vadd.f32 0.0, %v1484
  %v1486 = vpop.f32.mrb[0].mxu0
  %v1487 = vpop.f32.mrb[0].mxu0
  %v1488 = vadd.f32 0.0, %v1487
  %v1489 = vpop.f32.mrb[0].mxu0
  %1490 = vmatprep.mubr.bf16.mxu0 0
  %1491 = vmatmul.mubr.bf16.gmra.mrb[0].mxu0 %v844
  %v1492 = vpop.f32.mrb[0].mxu0
  %v1493 = vadd.f32 0.0, %v1492
  %v1494 = vpop.f32.mrb[0].mxu0
  %v1495 = vpop.f32.mrb[0].mxu0
  %v1496 = vadd.f32 0.0, %v1495
  %v1497 = vpop.f32.mrb[0].mxu0
  %1498 = vmatprep.mubr.bf16.mxu0 0
  %1499 = vmatmul.mubr.bf16.gmra.mrb[0].mxu0 %v847
  %v1500 = vpop.f32.mrb[0].mxu0
  %v1501 = vadd.f32 0.0, %v1500
  %v1502 = vpop.f32.mrb[0].mxu0
  %v1503 = vpop.f32.mrb[0].mxu0
  %v1504 = vadd.f32 0.0, %v1503
  %v1505 = vpop.f32.mrb[0].mxu0
  %1506 = vmatprep.mubr.bf16.mxu0 0
  %1507 = vmatmul.mubr.bf16.gmra.mrb[0].mxu0 %v850
  %v1508 = vpop.f32.mrb[0].mxu0
  %v1509 = vadd.f32 0.0, %v1508
  %v1510 = vpop.f32.mrb[0].mxu0
  %v1511 = vpop.f32.mrb[0].mxu0
  %v1512 = vadd.f32 0.0, %v1511
  %v1513 = vpop.f32.mrb[0].mxu0
  %1514 = vmatprep.mubr.bf16.mxu0 0
  %1515 = vmatmul.mubr.bf16.gmra.mrb[0].mxu0 %v853
  %v1516 = vpop.f32.mrb[0].mxu0
  %v1517 = vadd.f32 0.0, %v1516
  %v1518 = vpop.f32.mrb[0].mxu0
  %v1519 = vpop.f32.mrb[0].mxu0
  %v1520 = vadd.f32 0.0, %v1519
  %v1521 = vpop.f32.mrb[0].mxu0
  %1522 = vmatprep.mubr.bf16.mxu0 0
  %1523 = vmatmul.mubr.bf16.gmra.mrb[0].mxu0 %v856
  %v1524 = vpop.f32.mrb[0].mxu0
  %v1525 = vadd.f32 0.0, %v1524
  %v1526 = vpop.f32.mrb[0].mxu0
  %v1527 = vpop.f32.mrb[0].mxu0
  %v1528 = vadd.f32 0.0, %v1527
  %v1529 = vpop.f32.mrb[0].mxu0
  %1530 = vmatprep.mubr.bf16.mxu0 0
  %1531 = vmatmul.mubr.bf16.gmra.mrb[0].mxu0 %v859
  %v1532 = vpop.f32.mrb[0].mxu0
  %v1533 = vadd.f32 0.0, %v1532
  %v1534 = vpop.f32.mrb[0].mxu0
  %v1535 = vpop.f32.mrb[0].mxu0
  %v1536 = vadd.f32 0.0, %v1535
  %v1537 = vpop.f32.mrb[0].mxu0
  %1538 = vmatprep.mubr.bf16.mxu0 0
  %1539 = vmatmul.mubr.bf16.gmra.mrb[0].mxu0 %v862
  %v1540 = vpop.f32.mrb[0].mxu0
  %v1541 = vadd.f32 0.0, %v1540
  %v1542 = vpop.f32.mrb[0].mxu0
  %v1543 = vpop.f32.mrb[0].mxu0
  %v1544 = vadd.f32 0.0, %v1543
  %v1545 = vpop.f32.mrb[0].mxu0
  %1546 = vmatprep.mubr.bf16.mxu0 0
  %1547 = vmatmul.mubr.bf16.gmra.mrb[0].mxu0 %v865
  %v1548 = vpop.f32.mrb[0].mxu0
  %v1549 = vadd.f32 0.0, %v1548
  %v1550 = vpop.f32.mrb[0].mxu0
  %v1551 = vpop.f32.mrb[0].mxu0
  %v1552 = vadd.f32 0.0, %v1551
  %v1553 = vpop.f32.mrb[0].mxu0
  %1554 = vmatprep.mubr.bf16.mxu0 0
  %1555 = vmatmul.mubr.bf16.gmra.mrb[0].mxu0 %v868
  %v1556 = vpop.f32.mrb[0].mxu0
  %v1557 = vadd.f32 0.0, %v1556
  %v1558 = vpop.f32.mrb[0].mxu0
  %v1559 = vpop.f32.mrb[0].mxu0
  %v1560 = vadd.f32 0.0, %v1559
  %v1561 = vpop.f32.mrb[0].mxu0
  %1562 = vmatprep.mubr.bf16.mxu0 0
  %1563 = vmatmul.mubr.bf16.gmra.mrb[0].mxu0 %v871
  %v1564 = vpop.f32.mrb[0].mxu0
  %v1565 = vadd.f32 0.0, %v1564
  %v1566 = vpop.f32.mrb[0].mxu0
  %v1567 = vpop.f32.mrb[0].mxu0
  %v1568 = vadd.f32 0.0, %v1567
  %v1569 = vpop.f32.mrb[0].mxu0
  %1570 = vmatprep.mubr.bf16.mxu0 0
  %1571 = vmatmul.mubr.bf16.gmra.mrb[0].mxu0 %v874
  %v1572 = vpop.f32.mrb[0].mxu0
  %v1573 = vadd.f32 0.0, %v1572
  %v1574 = vpop.f32.mrb[0].mxu0
  %v1575 = vpop.f32.mrb[0].mxu0
  %v1576 = vadd.f32 0.0, %v1575
  %v1577 = vpop.f32.mrb[0].mxu0
  %1578 = vmatprep.mubr.bf16.mxu0 0
  %1579 = vmatmul.mubr.bf16.gmra.mrb[0].mxu0 %v877
  %v1580 = vpop.f32.mrb[0].mxu0
  %v1581 = vadd.f32 0.0, %v1580
  %v1582 = vpop.f32.mrb[0].mxu0
  %v1583 = vpop.f32.mrb[0].mxu0
  %v1584 = vadd.f32 0.0, %v1583
  %v1585 = vpop.f32.mrb[0].mxu0
  %1586 = vmatprep.mubr.bf16.mxu0 0
  %1587 = vmatmul.mubr.bf16.gmra.mrb[0].mxu0 %v880
  %v1588 = vpop.f32.mrb[0].mxu0
  %v1589 = vadd.f32 0.0, %v1588
  %v1590 = vpop.f32.mrb[0].mxu0
  %v1591 = vpop.f32.mrb[0].mxu0
  %v1592 = vadd.f32 0.0, %v1591
  %v1593 = vpop.f32.mrb[0].mxu0
  %1594 = vmatprep.mubr.bf16.mxu0 0
  %1595 = vmatmul.mubr.bf16.gmra.mrb[0].mxu0 %v883
  %v1596 = vpop.f32.mrb[0].mxu0
  %v1597 = vadd.f32 0.0, %v1596
  %v1598 = vpop.f32.mrb[0].mxu0
  %v1599 = vpop.f32.mrb[0].mxu0
  %v1600 = vadd.f32 0.0, %v1599
  %v1601 = vpop.f32.mrb[0].mxu0
  %1602 = vmatprep.mubr.bf16.mxu0 0
  %1603 = vmatmul.mubr.bf16.gmra.mrb[0].mxu0 %v886
  %v1604 = vpop.f32.mrb[0].mxu0
  %v1605 = vadd.f32 0.0, %v1604
  %v1606 = vpop.f32.mrb[0].mxu0
  %v1607 = vpop.f32.mrb[0].mxu0
  %v1608 = vadd.f32 0.0, %v1607
  %v1609 = vpop.f32.mrb[0].mxu0
  %1610 = vmatprep.mubr.bf16.mxu0 0
  %1611 = vmatmul.mubr.bf16.gmra.mrb[0].mxu0 %v889
  %v1612 = vpop.f32.mrb[0].mxu0
  %v1613 = vadd.f32 0.0, %v1612
  %v1614 = vpop.f32.mrb[0].mxu0
  %v1615 = vpop.f32.mrb[0].mxu0
  %v1616 = vadd.f32 0.0, %v1615
  %v1617 = vpop.f32.mrb[0].mxu0
  %1618 = vdwg.mxu0
  %v1619 = vmax.f32 %v933, %v1104
  %v1620 = vmax.f32 %v936, %v1109
  %v1621 = vmax.f32 %v941, %v1112
  %v1622 = vmax.f32 %v944, %v1117
  %v1623 = vmax.f32 %v949, %v1120
  %v1624 = vmax.f32 %v952, %v1125
  %v1625 = vmax.f32 %v957, %v1128
  %v1626 = vmax.f32 %v960, %v1133
  %v1627 = vmax.f32 %v965, %v1136
  %v1628 = vmax.f32 %v968, %v1141
  %v1629 = vmax.f32 %v973, %v1144
  %v1630 = vmax.f32 %v976, %v1149
  %v1631 = vmax.f32 %v981, %v1152
  %v1632 = vmax.f32 %v984, %v1157
  %v1633 = vmax.f32 %v989, %v1160
  %v1634 = vmax.f32 %v992, %v1165
  %v1635 = vmax.f32 %v997, %v1168
  %v1636 = vmax.f32 %v1000, %v1173
  %v1637 = vmax.f32 %v1005, %v1176
  %v1638 = vmax.f32 %v1008, %v1181
  %v1639 = vmax.f32 %v1013, %v1184
  %v1640 = vmax.f32 %v1016, %v1189
  %v1641 = vmax.f32 %v1021, %v1192
  %v1642 = vmax.f32 %v1024, %v1197
  %v1643 = vmax.f32 %v1029, %v1200
  %v1644 = vmax.f32 %v1032, %v1205
  %v1645 = vmax.f32 %v1037, %v1208
  %v1646 = vmax.f32 %v1040, %v1213
  %v1647 = vmax.f32 %v1045, %v1216
  %v1648 = vmax.f32 %v1048, %v1221
  %v1649 = vmax.f32 %v1053, %v1224
  %v1650 = vmax.f32 %v1056, %v1229
  %v1651 = vmax.f32 %v1061, %v1232
  %v1652 = vmax.f32 %v1064, %v1237
  %v1653 = vmax.f32 %v1069, %v1240
  %v1654 = vmax.f32 %v1072, %v1245
  %v1655 = vmax.f32 %v1077, %v1248
  %v1656 = vmax.f32 %v1080, %v1253
  %v1657 = vmax.f32 %v1085, %v1256
  %v1658 = vmax.f32 %v1088, %v1261
  %v1659 = vmax.f32 %v1093, %v1264
  %v1660 = vmax.f32 %v1096, %v1269
  %v1661 = vmax.f32 %v1101, %v1272
  %v1662 = vmax.f32 %v1277, %v1448
  %v1663 = vmax.f32 %v1280, %v1453
  %v1664 = vmax.f32 %v1285, %v1456
  %v1665 = vmax.f32 %v1288, %v1461
  %v1666 = vmax.f32 %v1293, %v1464
  %v1667 = vmax.f32 %v1296, %v1469
  %v1668 = vmax.f32 %v1301, %v1472
  %v1669 = vmax.f32 %v1304, %v1477
  %v1670 = vmax.f32 %v1309, %v1480
  %v1671 = vmax.f32 %v1312, %v1485
  %v1672 = vmax.f32 %v1317, %v1488
  %v1673 = vmax.f32 %v1320, %v1493
  %v1674 = vmax.f32 %v1325, %v1496
  %v1675 = vmax.f32 %v1328, %v1501
  %v1676 = vmax.f32 %v1333, %v1504
  %v1677 = vmax.f32 %v1336, %v1509
  %v1678 = vmax.f32 %v1341, %v1512
  %v1679 = vmax.f32 %v1344, %v1517
  %v1680 = vmax.f32 %v1349, %v1520
  %v1681 = vmax.f32 %v1352, %v1525
  %v1682 = vmax.f32 %v1357, %v1528
  %v1683 = vmax.f32 %v1360, %v1533
  %v1684 = vmax.f32 %v1365, %v1536
  %v1685 = vmax.f32 %v1368, %v1541
  %v1686 = vmax.f32 %v1373, %v1544
  %v1687 = vmax.f32 %v1376, %v1549
  %v1688 = vmax.f32 %v1381, %v1552
  %v1689 = vmax.f32 %v1384, %v1557
  %v1690 = vmax.f32 %v1389, %v1560
  %v1691 = vmax.f32 %v1392, %v1565
  %v1692 = vmax.f32 %v1397, %v1568
  %v1693 = vmax.f32 %v1400, %v1573
  %v1694 = vmax.f32 %v1405, %v1576
  %v1695 = vmax.f32 %v1408, %v1581
  %v1696 = vmax.f32 %v1413, %v1584
  %v1697 = vmax.f32 %v1416, %v1589
  %v1698 = vmax.f32 %v1421, %v1592
  %v1699 = vmax.f32 %v1424, %v1597
  %v1700 = vmax.f32 %v1429, %v1600
  %v1701 = vmax.f32 %v1432, %v1605
  %v1702 = vmax.f32 %v1437, %v1608
  %v1703 = vmax.f32 %v1440, %v1613
  %v1704 = vmax.f32 %v1445, %v1616
  %v1705 = vmax.f32 %v1619, %v1662
  %v1706 = vmax.f32 %v1620, %v1663
  %v1707 = vmax.f32 %v1621, %v1664
  %v1708 = vmax.f32 %v1622, %v1665
  %v1709 = vmax.f32 %v1623, %v1666
  %v1710 = vmax.f32 %v1624, %v1667
  %v1711 = vmax.f32 %v1625, %v1668
  %v1712 = vmax.f32 %v1626, %v1669
  %v1713 = vmax.f32 %v1627, %v1670
  %v1714 = vmax.f32 %v1628, %v1671
  %v1715 = vmax.f32 %v1629, %v1672
  %v1716 = vmax.f32 %v1630, %v1673
  %v1717 = vmax.f32 %v1631, %v1674
  %v1718 = vmax.f32 %v1632, %v1675
  %v1719 = vmax.f32 %v1633, %v1676
  %v1720 = vmax.f32 %v1634, %v1677
  %v1721 = vmax.f32 %v1635, %v1678
  %v1722 = vmax.f32 %v1636, %v1679
  %v1723 = vmax.f32 %v1637, %v1680
  %v1724 = vmax.f32 %v1638, %v1681
  %v1725 = vmax.f32 %v1639, %v1682
  %v1726 = vmax.f32 %v1640, %v1683
  %v1727 = vmax.f32 %v1641, %v1684
  %v1728 = vmax.f32 %v1642, %v1685
  %v1729 = vmax.f32 %v1643, %v1686
  %v1730 = vmax.f32 %v1644, %v1687
  %v1731 = vmax.f32 %v1645, %v1688
  %v1732 = vmax.f32 %v1646, %v1689
  %v1733 = vmax.f32 %v1647, %v1690
  %v1734 = vmax.f32 %v1648, %v1691
  %v1735 = vmax.f32 %v1649, %v1692
  %v1736 = vmax.f32 %v1650, %v1693
  %v1737 = vmax.f32 %v1651, %v1694
  %v1738 = vmax.f32 %v1652, %v1695
  %v1739 = vmax.f32 %v1653, %v1696
  %v1740 = vmax.f32 %v1654, %v1697
  %v1741 = vmax.f32 %v1655, %v1698
  %v1742 = vmax.f32 %v1656, %v1699
  %v1743 = vmax.f32 %v1657, %v1700
  %v1744 = vmax.f32 %v1658, %v1701
  %v1745 = vmax.f32 %v1659, %v1702
  %v1746 = vmax.f32 %v1660, %v1703
  %v1747 = vmax.f32 %v1661, %v1704
  %v1748 = vld [vmem:[%s2] sm:$0x1]
  %v1750 = vlaneseq
  %v1751 = vshrl.u32 %v1750, 7
  %v1752 = vsub.s32 0, %v1751
  %v1753 = vrot.slane %v1748, %v1752
  %v1755 = vadd.f32 %v1705, %v1753
  %v1756 = vadd.f32 %v1706, %v1753
  %v1757 = vadd.f32 %v1707, %v1753
  %v1758 = vadd.f32 %v1708, %v1753
  %v1759 = vadd.f32 %v1709, %v1753
  %v1760 = vadd.f32 %v1710, %v1753
  %v1761 = vadd.f32 %v1711, %v1753
  %v1762 = vadd.f32 %v1712, %v1753
  %v1763 = vadd.f32 %v1713, %v1753
  %v1764 = vadd.f32 %v1714, %v1753
  %v1765 = vadd.f32 %v1715, %v1753
  %v1766 = vadd.f32 %v1716, %v1753
  %v1767 = vadd.f32 %v1717, %v1753
  %v1768 = vadd.f32 %v1718, %v1753
  %v1769 = vadd.f32 %v1719, %v1753
  %v1770 = vadd.f32 %v1720, %v1753
  %v1771 = vadd.f32 %v1721, %v1753
  %v1772 = vadd.f32 %v1722, %v1753
  %v1773 = vadd.f32 %v1723, %v1753
  %v1774 = vadd.f32 %v1724, %v1753
  %v1775 = vadd.f32 %v1725, %v1753
  %v1776 = vadd.f32 %v1726, %v1753
  %v1777 = vadd.f32 %v1727, %v1753
  %v1778 = vadd.f32 %v1728, %v1753
  %v1779 = vadd.f32 %v1729, %v1753
  %v1780 = vadd.f32 %v1730, %v1753
  %v1781 = vadd.f32 %v1731, %v1753
  %v1782 = vadd.f32 %v1732, %v1753
  %v1783 = vadd.f32 %v1733, %v1753
  %v1784 = vadd.f32 %v1734, %v1753
  %v1785 = vadd.f32 %v1735, %v1753
  %v1786 = vadd.f32 %v1736, %v1753
  %v1787 = vadd.f32 %v1737, %v1753
  %v1788 = vadd.f32 %v1738, %v1753
  %v1789 = vadd.f32 %v1739, %v1753
  %v1790 = vadd.f32 %v1740, %v1753
  %v1791 = vadd.f32 %v1741, %v1753
  %v1792 = vadd.f32 %v1742, %v1753
  %v1793 = vadd.f32 %v1743, %v1753
  %v1794 = vadd.f32 %v1744, %v1753
  %v1795 = vadd.f32 %v1745, %v1753
  %v1796 = vadd.f32 %v1746, %v1753
  %v1797 = vadd.f32 %v1747, %v1753
  %v1798 = vmax.f32 %v1755, 0.0
  %v1799 = vmax.f32 %v1756, 0.0
  %v1800 = vmax.f32 %v1757, 0.0
  %v1801 = vmax.f32 %v1758, 0.0
  %v1802 = vmax.f32 %v1759, 0.0
  %v1803 = vmax.f32 %v1760, 0.0
  %v1804 = vmax.f32 %v1761, 0.0
  %v1805 = vmax.f32 %v1762, 0.0
  %v1806 = vmax.f32 %v1763, 0.0
  %v1807 = vmax.f32 %v1764, 0.0
  %v1808 = vmax.f32 %v1765, 0.0
  %v1809 = vmax.f32 %v1766, 0.0
  %v1810 = vmax.f32 %v1767, 0.0
  %v1811 = vmax.f32 %v1768, 0.0
  %v1812 = vmax.f32 %v1769, 0.0
  %v1813 = vmax.f32 %v1770, 0.0
  %v1814 = vmax.f32 %v1771, 0.0
  %v1815 = vmax.f32 %v1772, 0.0
  %v1816 = vmax.f32 %v1773, 0.0
  %v1817 = vmax.f32 %v1774, 0.0
  %v1818 = vmax.f32 %v1775, 0.0
  %v1819 = vmax.f32 %v1776, 0.0
  %v1820 = vmax.f32 %v1777, 0.0
  %v1821 = vmax.f32 %v1778, 0.0
  %v1822 = vmax.f32 %v1779, 0.0
  %v1823 = vmax.f32 %v1780, 0.0
  %v1824 = vmax.f32 %v1781, 0.0
  %v1825 = vmax.f32 %v1782, 0.0
  %v1826 = vmax.f32 %v1783, 0.0
  %v1827 = vmax.f32 %v1784, 0.0
  %v1828 = vmax.f32 %v1785, 0.0
  %v1829 = vmax.f32 %v1786, 0.0
  %v1830 = vmax.f32 %v1787, 0.0
  %v1831 = vmax.f32 %v1788, 0.0
  %v1832 = vmax.f32 %v1789, 0.0
  %v1833 = vmax.f32 %v1790, 0.0
  %v1834 = vmax.f32 %v1791, 0.0
  %v1835 = vmax.f32 %v1792, 0.0
  %v1836 = vmax.f32 %v1793, 0.0
  %v1837 = vmax.f32 %v1794, 0.0
  %v1838 = vmax.f32 %v1795, 0.0
  %v1839 = vmax.f32 %v1796, 0.0
  %v1840 = vmax.f32 %v1797, 0.0
  %vm1841 = vcmask 130048
  %1842 = vst.msk [vmem:[%s3] sm:$0xff] %vm1841, %v1798
  %1843 = vst.msk [vmem:[%s3 + $0x8] sm:$0xff] %vm1841, %v1799
  %1844 = vst.msk [vmem:[%s3 + $0x10] sm:$0xff] %vm1841, %v1800
  %1845 = vst.msk [vmem:[%s3 + $0x18] sm:$0xff] %vm1841, %v1801
  %1846 = vst.msk [vmem:[%s3 + $0x20] sm:$0xff] %vm1841, %v1802
  %1847 = vst.msk [vmem:[%s3 + $0x28] sm:$0xff] %vm1841, %v1803
  %1848 = vst.msk [vmem:[%s3 + $0x30] sm:$0xff] %vm1841, %v1804
  %1849 = vst.msk [vmem:[%s3 + $0x38] sm:$0xff] %vm1841, %v1805
  %1850 = vst.msk [vmem:[%s3 + $0x40] sm:$0xff] %vm1841, %v1806
  %1851 = vst.msk [vmem:[%s3 + $0x48] sm:$0xff] %vm1841, %v1807
  %1852 = vst.msk [vmem:[%s3 + $0x50] sm:$0xff] %vm1841, %v1808
  %1853 = vst.msk [vmem:[%s3 + $0x58] sm:$0xff] %vm1841, %v1809
  %1854 = vst.msk [vmem:[%s3 + $0x60] sm:$0xff] %vm1841, %v1810
  %1855 = vst.msk [vmem:[%s3 + $0x68] sm:$0xff] %vm1841, %v1811
  %1856 = vst.msk [vmem:[%s3 + $0x70] sm:$0xff] %vm1841, %v1812
  %1857 = vst.msk [vmem:[%s3 + $0x78] sm:$0xff] %vm1841, %v1813
  %1858 = vst.msk [vmem:[%s3 + $0x80] sm:$0xff] %vm1841, %v1814
  %1859 = vst.msk [vmem:[%s3 + $0x88] sm:$0xff] %vm1841, %v1815
  %1860 = vst.msk [vmem:[%s3 + $0x90] sm:$0xff] %vm1841, %v1816
  %1861 = vst.msk [vmem:[%s3 + $0x98] sm:$0xff] %vm1841, %v1817
  %1862 = vst.msk [vmem:[%s3 + $0xa0] sm:$0xff] %vm1841, %v1818
  %1863 = vst.msk [vmem:[%s3 + $0xa8] sm:$0xff] %vm1841, %v1819
  %1864 = vst.msk [vmem:[%s3 + $0xb0] sm:$0xff] %vm1841, %v1820
  %1865 = vst.msk [vmem:[%s3 + $0xb8] sm:$0xff] %vm1841, %v1821
  %1866 = vst.msk [vmem:[%s3 + $0xc0] sm:$0xff] %vm1841, %v1822
  %1867 = vst.msk [vmem:[%s3 + $0xc8] sm:$0xff] %vm1841, %v1823
  %1868 = vst.msk [vmem:[%s3 + $0xd0] sm:$0xff] %vm1841, %v1824
  %1869 = vst.msk [vmem:[%s3 + $0xd8] sm:$0xff] %vm1841, %v1825
  %1870 = vst.msk [vmem:[%s3 + $0xe0] sm:$0xff] %vm1841, %v1826
  %1871 = vst.msk [vmem:[%s3 + $0xe8] sm:$0xff] %vm1841, %v1827
  %1872 = vst.msk [vmem:[%s3 + $0xf0] sm:$0xff] %vm1841, %v1828
  %1873 = vst.msk [vmem:[%s3 + $0xf8] sm:$0xff] %vm1841, %v1829
  %1874 = vst.msk [vmem:[%s3 + $0x100] sm:$0xff] %vm1841, %v1830
  %1875 = vst.msk [vmem:[%s3 + $0x108] sm:$0xff] %vm1841, %v1831
  %1876 = vst.msk [vmem:[%s3 + $0x110] sm:$0xff] %vm1841, %v1832
  %1877 = vst.msk [vmem:[%s3 + $0x118] sm:$0xff] %vm1841, %v1833
  %1878 = vst.msk [vmem:[%s3 + $0x120] sm:$0xff] %vm1841, %v1834
  %1879 = vst.msk [vmem:[%s3 + $0x128] sm:$0xff] %vm1841, %v1835
  %1880 = vst.msk [vmem:[%s3 + $0x130] sm:$0xff] %vm1841, %v1836
  %1881 = vst.msk [vmem:[%s3 + $0x138] sm:$0xff] %vm1841, %v1837
  %1882 = vst.msk [vmem:[%s3 + $0x140] sm:$0xff] %vm1841, %v1838
  %1883 = vst.msk [vmem:[%s3 + $0x148] sm:$0xff] %vm1841, %v1839
  %1884 = vst.msk [vmem:[%s3 + $0x150] sm:$0xff] %vm1841, %v1840
  // Predicated region
  $region14: #{fashion_cnn_forward.3} parent=0 // pred_check
    _
  $region15: #{fashion_cnn_forward.3} parent=0 // pred_check_branch
    %1886 = sbr.rel (0) target = $region17
  $region16: #{fashion_cnn_forward.3} parent=0 // pred_region
    _
  $region17: #{fashion_cnn_forward.3} parent=0 // pred_fallthru
    _
  // Predicated region
  $region18: #{fashion_cnn_forward.3} parent=0 // pred_check
    _
  $region19: #{fashion_cnn_forward.3} parent=0 // pred_check_branch
    %1888 = sbr.rel (0) target = $region21
  $region20: #{fashion_cnn_forward.3} parent=0 // pred_region
    _
  $region21: #{fashion_cnn_forward.3} parent=0 // pred_fallthru
    _

// kernel: fashion_cnn_forward.4
$region0: #{fashion_cnn_forward.4}
  #allocation0 [shape = 'u32[]', space=smem, size = 0x4, offset = 0x4, fixed_abs, tag = 'smem constant byte address 0x4 - core index']
  #allocation1 [shape = 'u32[144,128]{1,0:T(1,128)}', space=vmem, size = 0x12000, scoped, tag = 'internal scratch']
  %s0 = inlined_call_operand.vmem [shape: bf16[128,400], index: 0, kind: input, shape index: {}]
  %s1 = inlined_call_operand.vmem [shape: bf16[400,32], index: 1, kind: input, shape index: {}]
  %s2 = inlined_call_operand.vmem [shape: f32[1,32], index: 2, kind: input, shape index: {}]
  %s3 = inlined_call_operand.vmem [shape: f32[32,32], index: 3, kind: output, shape index: {}]
  %s4 = sld [smem:[#allocation0]]
  $region22: #{fashion_cnn_forward.4} parent=0
    _
  %s6 = ssub.s32 1, %s4
  %s7 = scalar_select 0, %s6, %s4
  // Predicated region
  $region2: #{fashion_cnn_forward.4} parent=0 // pred_check
    _
  $region3: #{fashion_cnn_forward.4} parent=0 // pred_check_branch
    %9 = sbr.rel (0) target = $region5
  $region4: #{fashion_cnn_forward.4} parent=0 // pred_region
    _
  $region5: #{fashion_cnn_forward.4} parent=0 // pred_fallthru
    _
  // Predicated region
  $region6: #{fashion_cnn_forward.4} parent=0 // pred_check
    _
  $region7: #{fashion_cnn_forward.4} parent=0 // pred_check_branch
    %11 = sbr.rel (0) target = $region9
  $region8: #{fashion_cnn_forward.4} parent=0 // pred_region
    _
  $region9: #{fashion_cnn_forward.4} parent=0 // pred_fallthru
    _
  // Predicated region
  $region10: #{fashion_cnn_forward.4} parent=0 // pred_check
    _
  $region11: #{fashion_cnn_forward.4} parent=0 // pred_check_branch
    %13 = sbr.rel (0) target = $region13
  $region12: #{fashion_cnn_forward.4} parent=0 // pred_region
    _
  $region13: #{fashion_cnn_forward.4} parent=0 // pred_fallthru
    _
  %v15 = vld [vmem:[%s0] sm:$0xff]
  %v16 = vld [vmem:[%s0 + $0x8] sm:$0xff]
  %v17 = vld [vmem:[%s0 + $0x10] sm:$0xff]
  %v18 = vld [vmem:[%s0 + $0x18] sm:$0xff]
  %v19 = vld [vmem:[%s0 + $0x20] sm:$0xff]
  %v20 = vld [vmem:[%s0 + $0x28] sm:$0xff]
  %v21 = vld [vmem:[%s0 + $0x30] sm:$0xff]
  %v22 = vld [vmem:[%s0 + $0x38] sm:$0xff]
  %v23 = vld [vmem:[%s0 + $0x40] sm:$0xff]
  %v24 = vld [vmem:[%s0 + $0x48] sm:$0xff]
  %v25 = vld [vmem:[%s0 + $0x50] sm:$0xff]
  %v26 = vld [vmem:[%s0 + $0x58] sm:$0xff]
  %v27 = vld [vmem:[%s0 + $0x60] sm:$0xff]
  %v28 = vld [vmem:[%s0 + $0x68] sm:$0xff]
  %v29 = vld [vmem:[%s0 + $0x70] sm:$0xff]
  %v30 = vld [vmem:[%s0 + $0x78] sm:$0xff]
  %v31 = vld [vmem:[%s0 + $0x80] sm:$0xff]
  %v32 = vld [vmem:[%s0 + $0x88] sm:$0xff]
  %v33 = vld [vmem:[%s0 + $0x90] sm:$0xff]
  %v34 = vld [vmem:[%s0 + $0x98] sm:$0xff]
  %v35 = vld [vmem:[%s0 + $0xa0] sm:$0xff]
  %v36 = vld [vmem:[%s0 + $0xa8] sm:$0xff]
  %v37 = vld [vmem:[%s0 + $0xb0] sm:$0xff]
  %v38 = vld [vmem:[%s0 + $0xb8] sm:$0xff]
  %v39 = vld [vmem:[%s0 + $0xc0] sm:$0xff]
  %v40 = vld [vmem:[%s0 + $0xc8] sm:$0xff]
  %v41 = vld [vmem:[%s0 + $0xd0] sm:$0xff]
  %v42 = vld [vmem:[%s0 + $0xd8] sm:$0xff]
  %v43 = vld [vmem:[%s0 + $0xe0] sm:$0xff]
  %v44 = vld [vmem:[%s0 + $0xe8] sm:$0xff]
  %v45 = vld [vmem:[%s0 + $0xf0] sm:$0xff]
  %v46 = vld [vmem:[%s0 + $0xf8] sm:$0xff]
  %v47 = vld [vmem:[%s1] sm:$0xf]
  %v48 = vld [vmem:[%s1 + $0x4] sm:$0xf]
  %v49 = vld [vmem:[%s1 + $0x8] sm:$0xf]
  %v50 = vld [vmem:[%s1 + $0xc] sm:$0xf]
  %v51 = vld [vmem:[%s1 + $0x10] sm:$0xf]
  %v52 = vld [vmem:[%s1 + $0x14] sm:$0xf]
  %v53 = vld [vmem:[%s1 + $0x18] sm:$0xf]
  %v54 = vld [vmem:[%s1 + $0x1c] sm:$0xf]
  %v55 = vld [vmem:[%s1 + $0x20] sm:$0xf]
  %v56 = vld [vmem:[%s1 + $0x24] sm:$0xf]
  %v57 = vld [vmem:[%s1 + $0x28] sm:$0xf]
  %v58 = vld [vmem:[%s1 + $0x2c] sm:$0xf]
  %v59 = vld [vmem:[%s1 + $0x30] sm:$0xf]
  %v60 = vld [vmem:[%s1 + $0x34] sm:$0xf]
  %v61 = vld [vmem:[%s1 + $0x38] sm:$0xf]
  %v62 = vld [vmem:[%s1 + $0x3c] sm:$0xf]
  %v63 = vld [vmem:[%s1 + $0x40] sm:$0xf]
  %v64 = vld [vmem:[%s1 + $0x44] sm:$0xf]
  %v65 = vld [vmem:[%s1 + $0x48] sm:$0xf]
  %v66 = vld [vmem:[%s1 + $0x4c] sm:$0xf]
  %v67 = vld [vmem:[%s1 + $0x50] sm:$0xf]
  %v68 = vld [vmem:[%s1 + $0x54] sm:$0xf]
  %v69 = vld [vmem:[%s1 + $0x58] sm:$0xf]
  %v70 = vld [vmem:[%s1 + $0x5c] sm:$0xf]
  %v71 = vld [vmem:[%s1 + $0x60] sm:$0xf]
  %v72 = vld [vmem:[%s1 + $0x64] sm:$0xf]
  %v73 = vld [vmem:[%s1 + $0x68] sm:$0xf]
  %v74 = vld [vmem:[%s1 + $0x6c] sm:$0xf]
  %v75 = vld [vmem:[%s1 + $0x70] sm:$0xf]
  %v76 = vld [vmem:[%s1 + $0x74] sm:$0xf]
  %v77 = vld [vmem:[%s1 + $0x78] sm:$0xf]
  %v78 = vld [vmem:[%s1 + $0x7c] sm:$0xf]
  %v79 = vld [vmem:[%s1 + $0x80] sm:$0xf]
  %v80 = vld [vmem:[%s1 + $0x84] sm:$0xf]
  %v81 = vld [vmem:[%s1 + $0x88] sm:$0xf]
  %v82 = vld [vmem:[%s1 + $0x8c] sm:$0xf]
  %v83 = vld [vmem:[%s1 + $0x90] sm:$0xf]
  %v84 = vld [vmem:[%s1 + $0x94] sm:$0xf]
  %v85 = vld [vmem:[%s1 + $0x98] sm:$0xf]
  %v86 = vld [vmem:[%s1 + $0x9c] sm:$0xf]
  %v87 = vld [vmem:[%s1 + $0xa0] sm:$0xf]
  %v88 = vld [vmem:[%s1 + $0xa4] sm:$0xf]
  %v89 = vld [vmem:[%s1 + $0xa8] sm:$0xf]
  %v90 = vld [vmem:[%s1 + $0xac] sm:$0xf]
  %v91 = vld [vmem:[%s1 + $0xb0] sm:$0xf]
  %v92 = vld [vmem:[%s1 + $0xb4] sm:$0xf]
  %v93 = vld [vmem:[%s1 + $0xb8] sm:$0xf]
  %v94 = vld [vmem:[%s1 + $0xbc] sm:$0xf]
  %v95 = vld [vmem:[%s1 + $0xc0] sm:$0xf]
  %v96 = vld [vmem:[%s1 + $0xc4] sm:$0xf]
  %v129 = vunpack.c.l.b16 %v15
  %v130 = vunpack.c.h.b16 %v15
  %v131 = vunpack.c.l.b16 %v16
  %v132 = vunpack.c.h.b16 %v16
  %v133 = vunpack.c.l.b16 %v17
  %v134 = vunpack.c.h.b16 %v17
  %v135 = vunpack.c.l.b16 %v18
  %v136 = vunpack.c.h.b16 %v18
  %v137 = vunpack.c.l.b16 %v19
  %v138 = vunpack.c.h.b16 %v19
  %v139 = vunpack.c.l.b16 %v20
  %v140 = vunpack.c.h.b16 %v20
  %v141 = vunpack.c.l.b16 %v21
  %v142 = vunpack.c.h.b16 %v21
  %v143 = vunpack.c.l.b16 %v22
  %v144 = vunpack.c.h.b16 %v22
  %v145 = vunpack.c.l.b16 %v23
  %v146 = vunpack.c.h.b16 %v23
  %v147 = vunpack.c.l.b16 %v24
  %v148 = vunpack.c.h.b16 %v24
  %v149 = vunpack.c.l.b16 %v25
  %v150 = vunpack.c.h.b16 %v25
  %v151 = vunpack.c.l.b16 %v26
  %v152 = vunpack.c.h.b16 %v26
  %v153 = vunpack.c.l.b16 %v27
  %v154 = vunpack.c.h.b16 %v27
  %v155 = vunpack.c.l.b16 %v28
  %v156 = vunpack.c.h.b16 %v28
  %v157 = vunpack.c.l.b16 %v29
  %v158 = vunpack.c.h.b16 %v29
  %v159 = vunpack.c.l.b16 %v30
  %v160 = vunpack.c.h.b16 %v30
  %v161 = vunpack.c.l.b16 %v31
  %v162 = vunpack.c.h.b16 %v31
  %v163 = vunpack.c.l.b16 %v32
  %v164 = vunpack.c.h.b16 %v32
  %v165 = vunpack.c.l.b16 %v33
  %v166 = vunpack.c.h.b16 %v33
  %v167 = vunpack.c.l.b16 %v34
  %v168 = vunpack.c.h.b16 %v34
  %v169 = vunpack.c.l.b16 %v35
  %v170 = vunpack.c.h.b16 %v35
  %v171 = vunpack.c.l.b16 %v36
  %v172 = vunpack.c.h.b16 %v36
  %v173 = vunpack.c.l.b16 %v37
  %v174 = vunpack.c.h.b16 %v37
  %v175 = vunpack.c.l.b16 %v38
  %v176 = vunpack.c.h.b16 %v38
  %v177 = vunpack.c.l.b16 %v39
  %v178 = vunpack.c.h.b16 %v39
  %v179 = vunpack.c.l.b16 %v40
  %v180 = vunpack.c.h.b16 %v40
  %v181 = vunpack.c.l.b16 %v41
  %v182 = vunpack.c.h.b16 %v41
  %v183 = vunpack.c.l.b16 %v42
  %v184 = vunpack.c.h.b16 %v42
  %v185 = vunpack.c.l.b16 %v43
  %v186 = vunpack.c.h.b16 %v43
  %v187 = vunpack.c.l.b16 %v44
  %v188 = vunpack.c.h.b16 %v44
  %v189 = vunpack.c.l.b16 %v45
  %v190 = vunpack.c.h.b16 %v45
  %v191 = vunpack.c.l.b16 %v46
  %v192 = vunpack.c.h.b16 %v46
  %v193 = vpack.c.b16 %v133, %v129
  %v194 = vpack.c.b16 %v134, %v130
  %v195 = vpack.c.b16 %v135, %v131
  %v196 = vpack.c.b16 %v136, %v132
  %v197 = vpack.c.b16 %v141, %v137
  %v198 = vpack.c.b16 %v142, %v138
  %v199 = vpack.c.b16 %v143, %v139
  %v200 = vpack.c.b16 %v144, %v140
  %v201 = vpack.c.b16 %v149, %v145
  %v202 = vpack.c.b16 %v150, %v146
  %v203 = vpack.c.b16 %v151, %v147
  %v204 = vpack.c.b16 %v152, %v148
  %v205 = vpack.c.b16 %v157, %v153
  %v206 = vpack.c.b16 %v158, %v154
  %v207 = vpack.c.b16 %v159, %v155
  %v208 = vpack.c.b16 %v160, %v156
  %v209 = vpack.c.b16 %v165, %v161
  %v210 = vpack.c.b16 %v166, %v162
  %v211 = vpack.c.b16 %v167, %v163
  %v212 = vpack.c.b16 %v168, %v164
  %v213 = vpack.c.b16 %v173, %v169
  %v214 = vpack.c.b16 %v174, %v170
  %v215 = vpack.c.b16 %v175, %v171
  %v216 = vpack.c.b16 %v176, %v172
  %v217 = vpack.c.b16 %v181, %v177
  %v218 = vpack.c.b16 %v182, %v178
  %v219 = vpack.c.b16 %v183, %v179
  %v220 = vpack.c.b16 %v184, %v180
  %v221 = vpack.c.b16 %v189, %v185
  %v222 = vpack.c.b16 %v190, %v186
  %v223 = vpack.c.b16 %v191, %v187
  %v224 = vpack.c.b16 %v192, %v188
  %v299 = vunpack.c.l.b16 %v47
  %v300 = vunpack.c.l.b16 %v48
  %v301 = vunpack.c.l.b16 %v49
  %v302 = vunpack.c.l.b16 %v50
  %v303 = vunpack.c.l.b16 %v51
  %v304 = vunpack.c.l.b16 %v52
  %v305 = vunpack.c.l.b16 %v53
  %v306 = vunpack.c.l.b16 %v54
  %v307 = vunpack.c.l.b16 %v55
  %v308 = vunpack.c.l.b16 %v56
  %v309 = vunpack.c.l.b16 %v57
  %v310 = vunpack.c.l.b16 %v58
  %v311 = vunpack.c.l.b16 %v59
  %v312 = vunpack.c.l.b16 %v60
  %v313 = vunpack.c.l.b16 %v61
  %v314 = vunpack.c.l.b16 %v62
  %v315 = vunpack.c.l.b16 %v63
  %v316 = vunpack.c.l.b16 %v64
  %v317 = vunpack.c.l.b16 %v65
  %v318 = vunpack.c.l.b16 %v66
  %v319 = vunpack.c.l.b16 %v67
  %v320 = vunpack.c.l.b16 %v68
  %v321 = vunpack.c.l.b16 %v69
  %v322 = vunpack.c.l.b16 %v70
  %v323 = vunpack.c.l.b16 %v71
  %v324 = vunpack.c.l.b16 %v72
  %v325 = vunpack.c.l.b16 %v73
  %v326 = vunpack.c.l.b16 %v74
  %v327 = vunpack.c.l.b16 %v75
  %v328 = vunpack.c.l.b16 %v76
  %v329 = vunpack.c.l.b16 %v77
  %v330 = vunpack.c.l.b16 %v78
  %v331 = vunpack.c.l.b16 %v79
  %v332 = vunpack.c.l.b16 %v80
  %v333 = vunpack.c.l.b16 %v81
  %v334 = vunpack.c.l.b16 %v82
  %v335 = vunpack.c.l.b16 %v83
  %v336 = vunpack.c.l.b16 %v84
  %v337 = vunpack.c.l.b16 %v85
  %v338 = vunpack.c.l.b16 %v86
  %v339 = vunpack.c.l.b16 %v87
  %v340 = vunpack.c.l.b16 %v88
  %v341 = vunpack.c.l.b16 %v89
  %v342 = vunpack.c.l.b16 %v90
  %v343 = vunpack.c.l.b16 %v91
  %v344 = vunpack.c.l.b16 %v92
  %v345 = vunpack.c.l.b16 %v93
  %v346 = vunpack.c.l.b16 %v94
  %v347 = vunpack.c.l.b16 %v95
  %v348 = vunpack.c.l.b16 %v96
  %v349 = vpack.c.b16 %v300, %v299
  %v350 = vpack.c.b16 %v302, %v301
  %v351 = vpack.c.b16 %v304, %v303
  %v352 = vpack.c.b16 %v306, %v305
  %v353 = vpack.c.b16 %v308, %v307
  %v354 = vpack.c.b16 %v310, %v309
  %v355 = vpack.c.b16 %v312, %v311
  %v356 = vpack.c.b16 %v314, %v313
  %v357 = vpack.c.b16 %v316, %v315
  %v358 = vpack.c.b16 %v318, %v317
  %v359 = vpack.c.b16 %v320, %v319
  %v360 = vpack.c.b16 %v322, %v321
  %v361 = vpack.c.b16 %v324, %v323
  %v362 = vpack.c.b16 %v326, %v325
  %v363 = vpack.c.b16 %v328, %v327
  %v364 = vpack.c.b16 %v330, %v329
  %v365 = vpack.c.b16 %v332, %v331
  %v366 = vpack.c.b16 %v334, %v333
  %v367 = vpack.c.b16 %v336, %v335
  %v368 = vpack.c.b16 %v338, %v337
  %v369 = vpack.c.b16 %v340, %v339
  %v370 = vpack.c.b16 %v342, %v341
  %v371 = vpack.c.b16 %v344, %v343
  %v372 = vpack.c.b16 %v346, %v345
  %v373 = vpack.c.b16 %v348, %v347
  %vm399 = vcmask 130048
  %v401 = vsel %vm399, %v196, 0
  %v404 = vsel %vm399, %v200, 0
  %v407 = vsel %vm399, %v204, 0
  %v410 = vsel %vm399, %v208, 0
  %v413 = vsel %vm399, %v212, 0
  %v416 = vsel %vm399, %v216, 0
  %v419 = vsel %vm399, %v220, 0
  %v422 = vsel %vm399, %v224, 0
  %424 = vmatprep.subr.bf16.mxu0 0
  %425 = vmatpush1.bf16.msra.mxu0 %v349
  %426 = vmatprep.subr.bf16.mxu0 0
  %427 = vmatpush1.bf16.msra.mxu0 %v350
  %428 = vmatprep.subr.bf16.mxu0 0
  %429 = vmatpush1.bf16.msra.mxu0 %v351
  %430 = vmatprep.subr.bf16.mxu0 0
  %431 = vmatpush1.bf16.msra.mxu0 %v352
  %432 = vmatprep.subr.bf16.mxu0 0
  %433 = vmatpush1.bf16.msra.mxu0 %v353
  %434 = vmatprep.subr.bf16.mxu0 0
  %435 = vmatpush1.bf16.msra.mxu0 %v354
  %436 = vmatprep.subr.bf16.mxu0 0
  %437 = vmatpush1.bf16.msra.mxu0 %v355
  %438 = vmatprep.subr.bf16.mxu0 0
  %439 = vmatpush1.bf16.msra.mxu0 %v356
  %440 = vmatprep.subr.bf16.mxu0 0
  %441 = vmatpush1.bf16.msra.mxu0 %v357
  %442 = vmatprep.subr.bf16.mxu0 0
  %443 = vmatpush1.bf16.msra.mxu0 %v358
  %444 = vmatprep.subr.bf16.mxu0 0
  %445 = vmatpush1.bf16.msra.mxu0 %v359
  %446 = vmatprep.subr.bf16.mxu0 0
  %447 = vmatpush1.bf16.msra.mxu0 %v360
  %448 = vmatprep.subr.bf16.mxu0 0
  %449 = vmatpush1.bf16.msra.mxu0 %v361
  %450 = vmatprep.subr.bf16.mxu0 0
  %451 = vmatpush1.bf16.msra.mxu0 %v362
  %452 = vmatprep.subr.bf16.mxu0 0
  %453 = vmatpush1.bf16.msra.mxu0 %v363
  %454 = vmatprep.subr.bf16.mxu0 0
  %455 = vmatpush1.bf16.msra.mxu0 %v364
  %456 = vmatprep.mubr.bf16.mxu0 %v194
  %457 = vmatmul.mubr.bf16.gmra.mrb[0].mxu0 %v193
  %v458 = vpop.f32.mrb[0].mxu0
  %v459 = vadd.f32 0.0, %v458
  %v460 = vpop.f32.mrb[0].mxu0
  %v461 = vpop.f32.mrb[0].mxu0
  %v462 = vadd.f32 0.0, %v461
  %v463 = vpop.f32.mrb[0].mxu0
  %464 = vmatprep.mubr.bf16.mxu0 %v198
  %465 = vmatmul.mubr.bf16.gmra.mrb[0].mxu0 %v197
  %v466 = vpop.f32.mrb[0].mxu0
  %v467 = vadd.f32 0.0, %v466
  %v468 = vpop.f32.mrb[0].mxu0
  %v469 = vpop.f32.mrb[0].mxu0
  %v470 = vadd.f32 0.0, %v469
  %v471 = vpop.f32.mrb[0].mxu0
  %472 = vmatprep.mubr.bf16.mxu0 %v202
  %473 = vmatmul.mubr.bf16.gmra.mrb[0].mxu0 %v201
  %v474 = vpop.f32.mrb[0].mxu0
  %v475 = vadd.f32 0.0, %v474
  %v476 = vpop.f32.mrb[0].mxu0
  %v477 = vpop.f32.mrb[0].mxu0
  %v478 = vadd.f32 0.0, %v477
  %v479 = vpop.f32.mrb[0].mxu0
  %480 = vmatprep.mubr.bf16.mxu0 %v206
  %481 = vmatmul.mubr.bf16.gmra.mrb[0].mxu0 %v205
  %v482 = vpop.f32.mrb[0].mxu0
  %v483 = vadd.f32 0.0, %v482
  %v484 = vpop.f32.mrb[0].mxu0
  %v485 = vpop.f32.mrb[0].mxu0
  %v486 = vadd.f32 0.0, %v485
  %v487 = vpop.f32.mrb[0].mxu0
  %488 = vmatprep.mubr.bf16.mxu0 %v210
  %489 = vmatmul.mubr.bf16.gmra.mrb[0].mxu0 %v209
  %v490 = vpop.f32.mrb[0].mxu0
  %v491 = vadd.f32 0.0, %v490
  %v492 = vpop.f32.mrb[0].mxu0
  %v493 = vpop.f32.mrb[0].mxu0
  %v494 = vadd.f32 0.0, %v493
  %v495 = vpop.f32.mrb[0].mxu0
  %496 = vmatprep.mubr.bf16.mxu0 %v214
  %497 = vmatmul.mubr.bf16.gmra.mrb[0].mxu0 %v213
  %v498 = vpop.f32.mrb[0].mxu0
  %v499 = vadd.f32 0.0, %v498
  %v500 = vpop.f32.mrb[0].mxu0
  %v501 = vpop.f32.mrb[0].mxu0
  %v502 = vadd.f32 0.0, %v501
  %v503 = vpop.f32.mrb[0].mxu0
  %504 = vmatprep.mubr.bf16.mxu0 %v218
  %505 = vmatmul.mubr.bf16.gmra.mrb[0].mxu0 %v217
  %v506 = vpop.f32.mrb[0].mxu0
  %v507 = vadd.f32 0.0, %v506
  %v508 = vpop.f32.mrb[0].mxu0
  %v509 = vpop.f32.mrb[0].mxu0
  %v510 = vadd.f32 0.0, %v509
  %v511 = vpop.f32.mrb[0].mxu0
  %512 = vmatprep.mubr.bf16.mxu0 %v222
  %513 = vmatmul.mubr.bf16.gmra.mrb[0].mxu0 %v221
  %v514 = vpop.f32.mrb[0].mxu0
  %v515 = vadd.f32 0.0, %v514
  %v516 = vpop.f32.mrb[0].mxu0
  %v517 = vpop.f32.mrb[0].mxu0
  %v518 = vadd.f32 0.0, %v517
  %v519 = vpop.f32.mrb[0].mxu0
  %520 = vdwg.mxu0
  %521 = vmatprep.subr.bf16.mxu0 0
  %522 = vmatpush1.bf16.msra.mxu0 %v365
  %523 = vmatprep.subr.bf16.mxu0 0
  %524 = vmatpush1.bf16.msra.mxu0 %v366
  %525 = vmatprep.subr.bf16.mxu0 0
  %526 = vmatpush1.bf16.msra.mxu0 %v367
  %527 = vmatprep.subr.bf16.mxu0 0
  %528 = vmatpush1.bf16.msra.mxu0 %v368
  %529 = vmatprep.subr.bf16.mxu0 0
  %530 = vmatpush1.bf16.msra.mxu0 %v369
  %531 = vmatprep.subr.bf16.mxu0 0
  %532 = vmatpush1.bf16.msra.mxu0 %v370
  %533 = vmatprep.subr.bf16.mxu0 0
  %534 = vmatpush1.bf16.msra.mxu0 %v371
  %535 = vmatprep.subr.bf16.mxu0 0
  %536 = vmatpush1.bf16.msra.mxu0 %v372
  %537 = vmatprep.subr.bf16.mxu0 0
  %538 = vmatpush1.bf16.msra.mxu0 %v373
  %539 = vmatprep.subr.bf16.mxu0 0
  %540 = vmatpush1.bf16.msra.mxu0 0
  %541 = vmatprep.subr.bf16.mxu0 0
  %542 = vmatpush1.bf16.msra.mxu0 0
  %543 = vmatprep.subr.bf16.mxu0 0
  %544 = vmatpush1.bf16.msra.mxu0 0
  %545 = vmatprep.subr.bf16.mxu0 0
  %546 = vmatpush1.bf16.msra.mxu0 0
  %547 = vmatprep.subr.bf16.mxu0 0
  %548 = vmatpush1.bf16.msra.mxu0 0
  %549 = vmatprep.subr.bf16.mxu0 0
  %550 = vmatpush1.bf16.msra.mxu0 0
  %551 = vmatprep.subr.bf16.mxu0 0
  %552 = vmatpush1.bf16.msra.mxu0 0
  %553 = vmatprep.mubr.bf16.mxu0 %v401
  %554 = vmatmul.mubr.bf16.gmra.mrb[0].mxu0 %v195
  %v555 = vpop.f32.mrb[0].mxu0
  %v556 = vadd.f32 %v459, %v555
  %v557 = vpop.f32.mrb[0].mxu0
  %v558 = vpop.f32.mrb[0].mxu0
  %v559 = vadd.f32 %v462, %v558
  %v560 = vpop.f32.mrb[0].mxu0
  %561 = vmatprep.mubr.bf16.mxu0 %v404
  %562 = vmatmul.mubr.bf16.gmra.mrb[0].mxu0 %v199
  %v563 = vpop.f32.mrb[0].mxu0
  %v564 = vadd.f32 %v467, %v563
  %v565 = vpop.f32.mrb[0].mxu0
  %v566 = vpop.f32.mrb[0].mxu0
  %v567 = vadd.f32 %v470, %v566
  %v568 = vpop.f32.mrb[0].mxu0
  %569 = vmatprep.mubr.bf16.mxu0 %v407
  %570 = vmatmul.mubr.bf16.gmra.mrb[0].mxu0 %v203
  %v571 = vpop.f32.mrb[0].mxu0
  %v572 = vadd.f32 %v475, %v571
  %v573 = vpop.f32.mrb[0].mxu0
  %v574 = vpop.f32.mrb[0].mxu0
  %v575 = vadd.f32 %v478, %v574
  %v576 = vpop.f32.mrb[0].mxu0
  %577 = vmatprep.mubr.bf16.mxu0 %v410
  %578 = vmatmul.mubr.bf16.gmra.mrb[0].mxu0 %v207
  %v579 = vpop.f32.mrb[0].mxu0
  %v580 = vadd.f32 %v483, %v579
  %v581 = vpop.f32.mrb[0].mxu0
  %v582 = vpop.f32.mrb[0].mxu0
  %v583 = vadd.f32 %v486, %v582
  %v584 = vpop.f32.mrb[0].mxu0
  %585 = vmatprep.mubr.bf16.mxu0 %v413
  %586 = vmatmul.mubr.bf16.gmra.mrb[0].mxu0 %v211
  %v587 = vpop.f32.mrb[0].mxu0
  %v588 = vadd.f32 %v491, %v587
  %v589 = vpop.f32.mrb[0].mxu0
  %v590 = vpop.f32.mrb[0].mxu0
  %v591 = vadd.f32 %v494, %v590
  %v592 = vpop.f32.mrb[0].mxu0
  %593 = vmatprep.mubr.bf16.mxu0 %v416
  %594 = vmatmul.mubr.bf16.gmra.mrb[0].mxu0 %v215
  %v595 = vpop.f32.mrb[0].mxu0
  %v596 = vadd.f32 %v499, %v595
  %v597 = vpop.f32.mrb[0].mxu0
  %v598 = vpop.f32.mrb[0].mxu0
  %v599 = vadd.f32 %v502, %v598
  %v600 = vpop.f32.mrb[0].mxu0
  %601 = vmatprep.mubr.bf16.mxu0 %v419
  %602 = vmatmul.mubr.bf16.gmra.mrb[0].mxu0 %v219
  %v603 = vpop.f32.mrb[0].mxu0
  %v604 = vadd.f32 %v507, %v603
  %v605 = vpop.f32.mrb[0].mxu0
  %v606 = vpop.f32.mrb[0].mxu0
  %v607 = vadd.f32 %v510, %v606
  %v608 = vpop.f32.mrb[0].mxu0
  %609 = vmatprep.mubr.bf16.mxu0 %v422
  %610 = vmatmul.mubr.bf16.gmra.mrb[0].mxu0 %v223
  %v611 = vpop.f32.mrb[0].mxu0
  %v612 = vadd.f32 %v515, %v611
  %v613 = vpop.f32.mrb[0].mxu0
  %v614 = vpop.f32.mrb[0].mxu0
  %v615 = vadd.f32 %v518, %v614
  %v616 = vpop.f32.mrb[0].mxu0
  %617 = vdwg.mxu0
  %v618 = vmax.f32 %v556, %v572
  %v619 = vmax.f32 %v559, %v575
  %v620 = vmax.f32 %v564, %v580
  %v621 = vmax.f32 %v567, %v583
  %v622 = vmax.f32 %v588, %v604
  %v623 = vmax.f32 %v591, %v607
  %v624 = vmax.f32 %v596, %v612
  %v625 = vmax.f32 %v599, %v615
  %v626 = vmax.f32 %v618, %v622
  %v627 = vmax.f32 %v619, %v623
  %v628 = vmax.f32 %v620, %v624
  %v629 = vmax.f32 %v621, %v625
  %v630 = vld [vmem:[%s2] sm:$0x1]
  %v632 = vlaneseq
  %v633 = vshrl.u32 %v632, 7
  %v634 = vsub.s32 0, %v633
  %v635 = vrot.slane %v630, %v634
  %v637 = vadd.f32 %v626, %v635
  %v638 = vadd.f32 %v627, %v635
  %v639 = vadd.f32 %v628, %v635
  %v640 = vadd.f32 %v629, %v635
  %v641 = vmax.f32 %v637, 0.0
  %v642 = vmax.f32 %v638, 0.0
  %v643 = vmax.f32 %v639, 0.0
  %v644 = vmax.f32 %v640, 0.0
  %vm645 = vcmask 261120
  %646 = vst.msk [vmem:[%s3] sm:$0xff] %vm645, %v641
  %647 = vst.msk [vmem:[%s3 + $0x8] sm:$0xff] %vm645, %v642
  %648 = vst.msk [vmem:[%s3 + $0x10] sm:$0xff] %vm645, %v643
  %649 = vst.msk [vmem:[%s3 + $0x18] sm:$0xff] %vm645, %v644
  // Predicated region
  $region14: #{fashion_cnn_forward.4} parent=0 // pred_check
    _
  $region15: #{fashion_cnn_forward.4} parent=0 // pred_check_branch
    %651 = sbr.rel (0) target = $region17
  $region16: #{fashion_cnn_forward.4} parent=0 // pred_region
    _
  $region17: #{fashion_cnn_forward.4} parent=0 // pred_fallthru
    _
  // Predicated region
  $region18: #{fashion_cnn_forward.4} parent=0 // pred_check
    _
  $region19: #{fashion_cnn_forward.4} parent=0 // pred_check_branch
    %653 = sbr.rel (0) target = $region21
  $region20: #{fashion_cnn_forward.4} parent=0 // pred_region
    _
  $region21: #{fashion_cnn_forward.4} parent=0 // pred_fallthru
    _

// kernel: fashion_cnn_forward.5
$region0: #{fashion_cnn_forward.5}
  #allocation0 [shape = 'u32[]', space=smem, size = 0x4, offset = 0x4, fixed_abs, tag = 'smem constant byte address 0x4 - core index']
  #allocation1 [shape = 'u32[144,128]{1,0:T(1,128)}', space=vmem, size = 0x12000, scoped, tag = 'internal scratch']
  %s0 = inlined_call_operand.vmem [shape: bf16[8,512], index: 0, kind: input, shape index: {}]
  %s1 = inlined_call_operand.vmem [shape: bf16[512,128], index: 1, kind: input, shape index: {}]
  %s2 = inlined_call_operand.vmem [shape: f32[1,128], index: 2, kind: input, shape index: {}]
  %s3 = inlined_call_operand.vmem [shape: bf16[128,128], index: 3, kind: input, shape index: {}]
  %s4 = inlined_call_operand.vmem [shape: f32[1,128], index: 4, kind: input, shape index: {}]
  %s5 = inlined_call_operand.vmem [shape: bf16[128,128], index: 5, kind: input, shape index: {}]
  %s6 = inlined_call_operand.vmem [shape: f32[1,128], index: 6, kind: input, shape index: {}]
  %s7 = inlined_call_operand.vmem [shape: f32[8,128], index: 7, kind: output, shape index: {}]
  %s8 = sld [smem:[#allocation0]]
  $region38: #{fashion_cnn_forward.5} parent=0
    _
  %s10 = ssub.s32 1, %s8
  %s11 = scalar_select 0, %s10, %s8
  // Predicated region
  $region2: #{fashion_cnn_forward.5} parent=0 // pred_check
    _
  $region3: #{fashion_cnn_forward.5} parent=0 // pred_check_branch
    %13 = sbr.rel (0) target = $region5
  $region4: #{fashion_cnn_forward.5} parent=0 // pred_region
    _
  $region5: #{fashion_cnn_forward.5} parent=0 // pred_fallthru
    _
  // Predicated region
  $region6: #{fashion_cnn_forward.5} parent=0 // pred_check
    _
  $region7: #{fashion_cnn_forward.5} parent=0 // pred_check_branch
    %15 = sbr.rel (0) target = $region9
  $region8: #{fashion_cnn_forward.5} parent=0 // pred_region
    _
  $region9: #{fashion_cnn_forward.5} parent=0 // pred_fallthru
    _
  // Predicated region
  $region10: #{fashion_cnn_forward.5} parent=0 // pred_check
    _
  $region11: #{fashion_cnn_forward.5} parent=0 // pred_check_branch
    %17 = sbr.rel (0) target = $region13
  $region12: #{fashion_cnn_forward.5} parent=0 // pred_region
    _
  $region13: #{fashion_cnn_forward.5} parent=0 // pred_fallthru
    _
  // Predicated region
  $region14: #{fashion_cnn_forward.5} parent=0 // pred_check
    _
  $region15: #{fashion_cnn_forward.5} parent=0 // pred_check_branch
    %19 = sbr.rel (0) target = $region17
  $region16: #{fashion_cnn_forward.5} parent=0 // pred_region
    _
  $region17: #{fashion_cnn_forward.5} parent=0 // pred_fallthru
    _
  // Predicated region
  $region18: #{fashion_cnn_forward.5} parent=0 // pred_check
    _
  $region19: #{fashion_cnn_forward.5} parent=0 // pred_check_branch
    %21 = sbr.rel (0) target = $region21
  $region20: #{fashion_cnn_forward.5} parent=0 // pred_region
    _
  $region21: #{fashion_cnn_forward.5} parent=0 // pred_fallthru
    _
  // Predicated region
  $region22: #{fashion_cnn_forward.5} parent=0 // pred_check
    _
  $region23: #{fashion_cnn_forward.5} parent=0 // pred_check_branch
    %23 = sbr.rel (0) target = $region25
  $region24: #{fashion_cnn_forward.5} parent=0 // pred_region
    _
  $region25: #{fashion_cnn_forward.5} parent=0 // pred_fallthru
    _
  // Predicated region
  $region26: #{fashion_cnn_forward.5} parent=0 // pred_check
    _
  $region27: #{fashion_cnn_forward.5} parent=0 // pred_check_branch
    %25 = sbr.rel (0) target = $region29
  $region28: #{fashion_cnn_forward.5} parent=0 // pred_region
    _
  $region29: #{fashion_cnn_forward.5} parent=0 // pred_fallthru
    _
  %v27 = vld [vmem:[%s0] sm:$0xff]
  %v28 = vld [vmem:[%s0 + $0x8] sm:$0xff]
  %v29 = vld [vmem:[%s1] sm:$0xf]
  %v30 = vld [vmem:[%s1 + $0x4] sm:$0xf]
  %v31 = vld [vmem:[%s1 + $0x8] sm:$0xf]
  %v32 = vld [vmem:[%s1 + $0xc] sm:$0xf]
  %v33 = vld [vmem:[%s1 + $0x10] sm:$0xf]
  %v34 = vld [vmem:[%s1 + $0x14] sm:$0xf]
  %v35 = vld [vmem:[%s1 + $0x18] sm:$0xf]
  %v36 = vld [vmem:[%s1 + $0x1c] sm:$0xf]
  %v37 = vld [vmem:[%s1 + $0x20] sm:$0xf]
  %v38 = vld [vmem:[%s1 + $0x24] sm:$0xf]
  %v39 = vld [vmem:[%s1 + $0x28] sm:$0xf]
  %v40 = vld [vmem:[%s1 + $0x2c] sm:$0xf]
  %v41 = vld [vmem:[%s1 + $0x30] sm:$0xf]
  %v42 = vld [vmem:[%s1 + $0x34] sm:$0xf]
  %v43 = vld [vmem:[%s1 + $0x38] sm:$0xf]
  %v44 = vld [vmem:[%s1 + $0x3c] sm:$0xf]
  %v45 = vld [vmem:[%s1 + $0x40] sm:$0xf]
  %v46 = vld [vmem:[%s1 + $0x44] sm:$0xf]
  %v47 = vld [vmem:[%s1 + $0x48] sm:$0xf]
  %v48 = vld [vmem:[%s1 + $0x4c] sm:$0xf]
  %v49 = vld [vmem:[%s1 + $0x50] sm:$0xf]
  %v50 = vld [vmem:[%s1 + $0x54] sm:$0xf]
  %v51 = vld [vmem:[%s1 + $0x58] sm:$0xf]
  %v52 = vld [vmem:[%s1 + $0x5c] sm:$0xf]
  %v53 = vld [vmem:[%s1 + $0x60] sm:$0xf]
  %v54 = vld [vmem:[%s1 + $0x64] sm:$0xf]
  %v55 = vld [vmem:[%s1 + $0x68] sm:$0xf]
  %v56 = vld [vmem:[%s1 + $0x6c] sm:$0xf]
  %v57 = vld [vmem:[%s1 + $0x70] sm:$0xf]
  %v58 = vld [vmem:[%s1 + $0x74] sm:$0xf]
  %v59 = vld [vmem:[%s1 + $0x78] sm:$0xf]
  %v60 = vld [vmem:[%s1 + $0x7c] sm:$0xf]
  %v61 = vld [vmem:[%s1 + $0x80] sm:$0xf]
  %v62 = vld [vmem:[%s1 + $0x84] sm:$0xf]
  %v63 = vld [vmem:[%s1 + $0x88] sm:$0xf]
  %v64 = vld [vmem:[%s1 + $0x8c] sm:$0xf]
  %v65 = vld [vmem:[%s1 + $0x90] sm:$0xf]
  %v66 = vld [vmem:[%s1 + $0x94] sm:$0xf]
  %v67 = vld [vmem:[%s1 + $0x98] sm:$0xf]
  %v68 = vld [vmem:[%s1 + $0x9c] sm:$0xf]
  %v69 = vld [vmem:[%s1 + $0xa0] sm:$0xf]
  %v70 = vld [vmem:[%s1 + $0xa4] sm:$0xf]
  %v71 = vld [vmem:[%s1 + $0xa8] sm:$0xf]
  %v72 = vld [vmem:[%s1 + $0xac] sm:$0xf]
  %v73 = vld [vmem:[%s1 + $0xb0] sm:$0xf]
  %v74 = vld [vmem:[%s1 + $0xb4] sm:$0xf]
  %v75 = vld [vmem:[%s1 + $0xb8] sm:$0xf]
  %v76 = vld [vmem:[%s1 + $0xbc] sm:$0xf]
  %v77 = vld [vmem:[%s1 + $0xc0] sm:$0xf]
  %v78 = vld [vmem:[%s1 + $0xc4] sm:$0xf]
  %v79 = vld [vmem:[%s1 + $0xc8] sm:$0xf]
  %v80 = vld [vmem:[%s1 + $0xcc] sm:$0xf]
  %v81 = vld [vmem:[%s1 + $0xd0] sm:$0xf]
  %v82 = vld [vmem:[%s1 + $0xd4] sm:$0xf]
  %v83 = vld [vmem:[%s1 + $0xd8] sm:$0xf]
  %v84 = vld [vmem:[%s1 + $0xdc] sm:$0xf]
  %v85 = vld [vmem:[%s1 + $0xe0] sm:$0xf]
  %v86 = vld [vmem:[%s1 + $0xe4] sm:$0xf]
  %v87 = vld [vmem:[%s1 + $0xe8] sm:$0xf]
  %v88 = vld [vmem:[%s1 + $0xec] sm:$0xf]
  %v89 = vld [vmem:[%s1 + $0xf0] sm:$0xf]
  %v90 = vld [vmem:[%s1 + $0xf4] sm:$0xf]
  %v91 = vld [vmem:[%s1 + $0xf8] sm:$0xf]
  %v92 = vld [vmem:[%s1 + $0xfc] sm:$0xf]
  %v93 = vld [vmem:[%s2] sm:$0x1]
  %v95 = vlaneseq
  %v96 = vshrl.u32 %v95, 7
  %v97 = vsub.s32 0, %v96
  %v98 = vrot.slane %v93, %v97
  %v102 = vunpack.c.l.b16 %v27
  %v103 = vunpack.c.h.b16 %v27
  %v104 = vunpack.c.l.b16 %v28
  %v105 = vunpack.c.h.b16 %v28
  %v106 = vpack.c.b16 %v102, %v102
  %v107 = vpack.c.b16 %v103, %v103
  %v108 = vpack.c.b16 %v104, %v104
  %v109 = vpack.c.b16 %v105, %v105
  %v178 = vunpack.c.l.b16 %v29
  %v179 = vunpack.c.l.b16 %v30
  %v180 = vunpack.c.l.b16 %v31
  %v181 = vunpack.c.l.b16 %v32
  %v182 = vunpack.c.l.b16 %v33
  %v183 = vunpack.c.l.b16 %v34
  %v184 = vunpack.c.l.b16 %v35
  %v185 = vunpack.c.l.b16 %v36
  %v186 = vunpack.c.l.b16 %v37
  %v187 = vunpack.c.l.b16 %v38
  %v188 = vunpack.c.l.b16 %v39
  %v189 = vunpack.c.l.b16 %v40
  %v190 = vunpack.c.l.b16 %v41
  %v191 = vunpack.c.l.b16 %v42
  %v192 = vunpack.c.l.b16 %v43
  %v193 = vunpack.c.l.b16 %v44
  %v194 = vunpack.c.l.b16 %v45
  %v195 = vunpack.c.l.b16 %v46
  %v196 = vunpack.c.l.b16 %v47
  %v197 = vunpack.c.l.b16 %v48
  %v198 = vunpack.c.l.b16 %v49
  %v199 = vunpack.c.l.b16 %v50
  %v200 = vunpack.c.l.b16 %v51
  %v201 = vunpack.c.l.b16 %v52
  %v202 = vunpack.c.l.b16 %v53
  %v203 = vunpack.c.l.b16 %v54
  %v204 = vunpack.c.l.b16 %v55
  %v205 = vunpack.c.l.b16 %v56
  %v206 = vunpack.c.l.b16 %v57
  %v207 = vunpack.c.l.b16 %v58
  %v208 = vunpack.c.l.b16 %v59
  %v209 = vunpack.c.l.b16 %v60
  %v210 = vunpack.c.l.b16 %v61
  %v211 = vunpack.c.l.b16 %v62
  %v212 = vunpack.c.l.b16 %v63
  %v213 = vunpack.c.l.b16 %v64
  %v214 = vunpack.c.l.b16 %v65
  %v215 = vunpack.c.l.b16 %v66
  %v216 = vunpack.c.l.b16 %v67
  %v217 = vunpack.c.l.b16 %v68
  %v218 = vunpack.c.l.b16 %v69
  %v219 = vunpack.c.l.b16 %v70
  %v220 = vunpack.c.l.b16 %v71
  %v221 = vunpack.c.l.b16 %v72
  %v222 = vunpack.c.l.b16 %v73
  %v223 = vunpack.c.l.b16 %v74
  %v224 = vunpack.c.l.b16 %v75
  %v225 = vunpack.c.l.b16 %v76
  %v226 = vunpack.c.l.b16 %v77
  %v227 = vunpack.c.l.b16 %v78
  %v228 = vunpack.c.l.b16 %v79
  %v229 = vunpack.c.l.b16 %v80
  %v230 = vunpack.c.l.b16 %v81
  %v231 = vunpack.c.l.b16 %v82
  %v232 = vunpack.c.l.b16 %v83
  %v233 = vunpack.c.l.b16 %v84
  %v234 = vunpack.c.l.b16 %v85
  %v235 = vunpack.c.l.b16 %v86
  %v236 = vunpack.c.l.b16 %v87
  %v237 = vunpack.c.l.b16 %v88
  %v238 = vunpack.c.l.b16 %v89
  %v239 = vunpack.c.l.b16 %v90
  %v240 = vunpack.c.l.b16 %v91
  %v241 = vunpack.c.l.b16 %v92
  %v242 = vpack.c.b16 %v179, %v178
  %v243 = vpack.c.b16 %v181, %v180
  %v244 = vpack.c.b16 %v183, %v182
  %v245 = vpack.c.b16 %v185, %v184
  %v246 = vpack.c.b16 %v187, %v186
  %v247 = vpack.c.b16 %v189, %v188
  %v248 = vpack.c.b16 %v191, %v190
  %v249 = vpack.c.b16 %v193, %v192
  %v250 = vpack.c.b16 %v195, %v194
  %v251 = vpack.c.b16 %v197, %v196
  %v252 = vpack.c.b16 %v199, %v198
  %v253 = vpack.c.b16 %v201, %v200
  %v254 = vpack.c.b16 %v203, %v202
  %v255 = vpack.c.b16 %v205, %v204
  %v256 = vpack.c.b16 %v207, %v206
  %v257 = vpack.c.b16 %v209, %v208
  %v258 = vpack.c.b16 %v211, %v210
  %v259 = vpack.c.b16 %v213, %v212
  %v260 = vpack.c.b16 %v215, %v214
  %v261 = vpack.c.b16 %v217, %v216
  %v262 = vpack.c.b16 %v219, %v218
  %v263 = vpack.c.b16 %v221, %v220
  %v264 = vpack.c.b16 %v223, %v222
  %v265 = vpack.c.b16 %v225, %v224
  %v266 = vpack.c.b16 %v227, %v226
  %v267 = vpack.c.b16 %v229, %v228
  %v268 = vpack.c.b16 %v231, %v230
  %v269 = vpack.c.b16 %v233, %v232
  %v270 = vpack.c.b16 %v235, %v234
  %v271 = vpack.c.b16 %v237, %v236
  %v272 = vpack.c.b16 %v239, %v238
  %v273 = vpack.c.b16 %v241, %v240
  %306 = vmatprep.subr.bf16.mxu0 0
  %307 = vmatpush1.bf16.msra.mxu0 %v242
  %308 = vmatprep.subr.bf16.mxu0 0
  %309 = vmatpush1.bf16.msra.mxu0 %v243
  %310 = vmatprep.subr.bf16.mxu0 0
  %311 = vmatpush1.bf16.msra.mxu0 %v244
  %312 = vmatprep.subr.bf16.mxu0 0
  %313 = vmatpush1.bf16.msra.mxu0 %v245
  %314 = vmatprep.subr.bf16.mxu0 0
  %315 = vmatpush1.bf16.msra.mxu0 %v246
  %316 = vmatprep.subr.bf16.mxu0 0
  %317 = vmatpush1.bf16.msra.mxu0 %v247
  %318 = vmatprep.subr.bf16.mxu0 0
  %319 = vmatpush1.bf16.msra.mxu0 %v248
  %320 = vmatprep.subr.bf16.mxu0 0
  %321 = vmatpush1.bf16.msra.mxu0 %v249
  %322 = vmatprep.subr.bf16.mxu0 0
  %323 = vmatpush1.bf16.msra.mxu0 %v250
  %324 = vmatprep.subr.bf16.mxu0 0
  %325 = vmatpush1.bf16.msra.mxu0 %v251
  %326 = vmatprep.subr.bf16.mxu0 0
  %327 = vmatpush1.bf16.msra.mxu0 %v252
  %328 = vmatprep.subr.bf16.mxu0 0
  %329 = vmatpush1.bf16.msra.mxu0 %v253
  %330 = vmatprep.subr.bf16.mxu0 0
  %331 = vmatpush1.bf16.msra.mxu0 %v254
  %332 = vmatprep.subr.bf16.mxu0 0
  %333 = vmatpush1.bf16.msra.mxu0 %v255
  %334 = vmatprep.subr.bf16.mxu0 0
  %335 = vmatpush1.bf16.msra.mxu0 %v256
  %336 = vmatprep.subr.bf16.mxu0 0
  %337 = vmatpush1.bf16.msra.mxu0 %v257
  %338 = vmatprep.mubr.bf16.mxu0 %v107
  %339 = vmatmul.mubr.bf16.gmra.mrb[0].mxu0 %v106
  %v340 = vpop.f32.mrb[0].mxu0
  %v341 = vadd.f32 %v98, %v340
  %v342 = vpop.f32.mrb[0].mxu0
  %v343 = vpop.f32.mrb[0].mxu0
  %v344 = vpop.f32.mrb[0].mxu0
  %345 = vdwg.mxu0
  %346 = vmatprep.subr.bf16.mxu0 0
  %347 = vmatpush1.bf16.msra.mxu0 %v258
  %348 = vmatprep.subr.bf16.mxu0 0
  %349 = vmatpush1.bf16.msra.mxu0 %v259
  %350 = vmatprep.subr.bf16.mxu0 0
  %351 = vmatpush1.bf16.msra.mxu0 %v260
  %352 = vmatprep.subr.bf16.mxu0 0
  %353 = vmatpush1.bf16.msra.mxu0 %v261
  %354 = vmatprep.subr.bf16.mxu0 0
  %355 = vmatpush1.bf16.msra.mxu0 %v262
  %356 = vmatprep.subr.bf16.mxu0 0
  %357 = vmatpush1.bf16.msra.mxu0 %v263
  %358 = vmatprep.subr.bf16.mxu0 0
  %359 = vmatpush1.bf16.msra.mxu0 %v264
  %360 = vmatprep.subr.bf16.mxu0 0
  %361 = vmatpush1.bf16.msra.mxu0 %v265
  %362 = vmatprep.subr.bf16.mxu0 0
  %363 = vmatpush1.bf16.msra.mxu0 %v266
  %364 = vmatprep.subr.bf16.mxu0 0
  %365 = vmatpush1.bf16.msra.mxu0 %v267
  %366 = vmatprep.subr.bf16.mxu0 0
  %367 = vmatpush1.bf16.msra.mxu0 %v268
  %368 = vmatprep.subr.bf16.mxu0 0
  %369 = vmatpush1.bf16.msra.mxu0 %v269
  %370 = vmatprep.subr.bf16.mxu0 0
  %371 = vmatpush1.bf16.msra.mxu0 %v270
  %372 = vmatprep.subr.bf16.mxu0 0
  %373 = vmatpush1.bf16.msra.mxu0 %v271
  %374 = vmatprep.subr.bf16.mxu0 0
  %375 = vmatpush1.bf16.msra.mxu0 %v272
  %376 = vmatprep.subr.bf16.mxu0 0
  %377 = vmatpush1.bf16.msra.mxu0 %v273
  %378 = vmatprep.mubr.bf16.mxu0 %v109
  %379 = vmatmul.mubr.bf16.gmra.mrb[0].mxu0 %v108
  %v380 = vpop.f32.mrb[0].mxu0
  %v381 = vadd.f32 %v341, %v380
  %v382 = vpop.f32.mrb[0].mxu0
  %v383 = vpop.f32.mrb[0].mxu0
  %v384 = vpop.f32.mrb[0].mxu0
  %385 = vdwg.mxu0
  %v386 = vmax.f32 %v381, 0.0
  %v387 = vpack.c.bf16 %v386, %v386
  %v388 = vld [vmem:[%s3] sm:$0xf]
  %v389 = vld [vmem:[%s3 + $0x4] sm:$0xf]
  %v390 = vld [vmem:[%s3 + $0x8] sm:$0xf]
  %v391 = vld [vmem:[%s3 + $0xc] sm:$0xf]
  %v392 = vld [vmem:[%s3 + $0x10] sm:$0xf]
  %v393 = vld [vmem:[%s3 + $0x14] sm:$0xf]
  %v394 = vld [vmem:[%s3 + $0x18] sm:$0xf]
  %v395 = vld [vmem:[%s3 + $0x1c] sm:$0xf]
  %v396 = vld [vmem:[%s3 + $0x20] sm:$0xf]
  %v397 = vld [vmem:[%s3 + $0x24] sm:$0xf]
  %v398 = vld [vmem:[%s3 + $0x28] sm:$0xf]
  %v399 = vld [vmem:[%s3 + $0x2c] sm:$0xf]
  %v400 = vld [vmem:[%s3 + $0x30] sm:$0xf]
  %v401 = vld [vmem:[%s3 + $0x34] sm:$0xf]
  %v402 = vld [vmem:[%s3 + $0x38] sm:$0xf]
  %v403 = vld [vmem:[%s3 + $0x3c] sm:$0xf]
  %v404 = vld [vmem:[%s4] sm:$0x1]
  %v406 = vlaneseq
  %v407 = vshrl.u32 %v406, 7
  %v408 = vsub.s32 0, %v407
  %v409 = vrot.slane %v404, %v408
  %v427 = vunpack.c.l.b16 %v388
  %v428 = vunpack.c.l.b16 %v389
  %v429 = vunpack.c.l.b16 %v390
  %v430 = vunpack.c.l.b16 %v391
  %v431 = vunpack.c.l.b16 %v392
  %v432 = vunpack.c.l.b16 %v393
  %v433 = vunpack.c.l.b16 %v394
  %v434 = vunpack.c.l.b16 %v395
  %v435 = vunpack.c.l.b16 %v396
  %v436 = vunpack.c.l.b16 %v397
  %v437 = vunpack.c.l.b16 %v398
  %v438 = vunpack.c.l.b16 %v399
  %v439 = vunpack.c.l.b16 %v400
  %v440 = vunpack.c.l.b16 %v401
  %v441 = vunpack.c.l.b16 %v402
  %v442 = vunpack.c.l.b16 %v403
  %v443 = vpack.c.b16 %v428, %v427
  %v444 = vpack.c.b16 %v430, %v429
  %v445 = vpack.c.b16 %v432, %v431
  %v446 = vpack.c.b16 %v434, %v433
  %v447 = vpack.c.b16 %v436, %v435
  %v448 = vpack.c.b16 %v438, %v437
  %v449 = vpack.c.b16 %v440, %v439
  %v450 = vpack.c.b16 %v442, %v441
  %459 = vmatprep.subr.bf16.mxu0 0
  %460 = vmatpush1.bf16.msra.mxu0 %v443
  %461 = vmatprep.subr.bf16.mxu0 0
  %462 = vmatpush1.bf16.msra.mxu0 %v444
  %463 = vmatprep.subr.bf16.mxu0 0
  %464 = vmatpush1.bf16.msra.mxu0 %v445
  %465 = vmatprep.subr.bf16.mxu0 0
  %466 = vmatpush1.bf16.msra.mxu0 %v446
  %467 = vmatprep.subr.bf16.mxu0 0
  %468 = vmatpush1.bf16.msra.mxu0 %v447
  %469 = vmatprep.subr.bf16.mxu0 0
  %470 = vmatpush1.bf16.msra.mxu0 %v448
  %471 = vmatprep.subr.bf16.mxu0 0
  %472 = vmatpush1.bf16.msra.mxu0 %v449
  %473 = vmatprep.subr.bf16.mxu0 0
  %474 = vmatpush1.bf16.msra.mxu0 %v450
  %475 = vmatprep.subr.bf16.mxu0 0
  %476 = vmatpush1.bf16.msra.mxu0 0
  %477 = vmatprep.subr.bf16.mxu0 0
  %478 = vmatpush1.bf16.msra.mxu0 0
  %479 = vmatprep.subr.bf16.mxu0 0
  %480 = vmatpush1.bf16.msra.mxu0 0
  %481 = vmatprep.subr.bf16.mxu0 0
  %482 = vmatpush1.bf16.msra.mxu0 0
  %483 = vmatprep.subr.bf16.mxu0 0
  %484 = vmatpush1.bf16.msra.mxu0 0
  %485 = vmatprep.subr.bf16.mxu0 0
  %486 = vmatpush1.bf16.msra.mxu0 0
  %487 = vmatprep.subr.bf16.mxu0 0
  %488 = vmatpush1.bf16.msra.mxu0 0
  %489 = vmatprep.subr.bf16.mxu0 0
  %490 = vmatpush1.bf16.msra.mxu0 0
  %491 = vmatprep.mubr.bf16.mxu0 0
  %492 = vmatmul.mubr.bf16.gmra.mrb[0].mxu0 %v387
  %v493 = vpop.f32.mrb[0].mxu0
  %v494 = vadd.f32 %v409, %v493
  %v495 = vpop.f32.mrb[0].mxu0
  %v496 = vpop.f32.mrb[0].mxu0
  %v497 = vpop.f32.mrb[0].mxu0
  %498 = vdwg.mxu0
  %v499 = vmax.f32 %v494, 0.0
  %v500 = vpack.c.bf16 %v499, %v499
  %v501 = vld [vmem:[%s5] sm:$0xf]
  %v502 = vld [vmem:[%s5 + $0x4] sm:$0xf]
  %v503 = vld [vmem:[%s5 + $0x8] sm:$0xf]
  %v504 = vld [vmem:[%s5 + $0xc] sm:$0xf]
  %v505 = vld [vmem:[%s5 + $0x10] sm:$0xf]
  %v506 = vld [vmem:[%s5 + $0x14] sm:$0xf]
  %v507 = vld [vmem:[%s5 + $0x18] sm:$0xf]
  %v508 = vld [vmem:[%s5 + $0x1c] sm:$0xf]
  %v509 = vld [vmem:[%s5 + $0x20] sm:$0xf]
  %v510 = vld [vmem:[%s5 + $0x24] sm:$0xf]
  %v511 = vld [vmem:[%s5 + $0x28] sm:$0xf]
  %v512 = vld [vmem:[%s5 + $0x2c] sm:$0xf]
  %v513 = vld [vmem:[%s5 + $0x30] sm:$0xf]
  %v514 = vld [vmem:[%s5 + $0x34] sm:$0xf]
  %v515 = vld [vmem:[%s5 + $0x38] sm:$0xf]
  %v516 = vld [vmem:[%s5 + $0x3c] sm:$0xf]
  %v517 = vld [vmem:[%s6] sm:$0x1]
  %v519 = vlaneseq
  %v520 = vshrl.u32 %v519, 7
  %v521 = vsub.s32 0, %v520
  %v522 = vrot.slane %v517, %v521
  %v540 = vunpack.c.l.b16 %v501
  %v541 = vunpack.c.l.b16 %v502
  %v542 = vunpack.c.l.b16 %v503
  %v543 = vunpack.c.l.b16 %v504
  %v544 = vunpack.c.l.b16 %v505
  %v545 = vunpack.c.l.b16 %v506
  %v546 = vunpack.c.l.b16 %v507
  %v547 = vunpack.c.l.b16 %v508
  %v548 = vunpack.c.l.b16 %v509
  %v549 = vunpack.c.l.b16 %v510
  %v550 = vunpack.c.l.b16 %v511
  %v551 = vunpack.c.l.b16 %v512
  %v552 = vunpack.c.l.b16 %v513
  %v553 = vunpack.c.l.b16 %v514
  %v554 = vunpack.c.l.b16 %v515
  %v555 = vunpack.c.l.b16 %v516
  %v556 = vpack.c.b16 %v541, %v540
  %v557 = vpack.c.b16 %v543, %v542
  %v558 = vpack.c.b16 %v545, %v544
  %v559 = vpack.c.b16 %v547, %v546
  %v560 = vpack.c.b16 %v549, %v548
  %v561 = vpack.c.b16 %v551, %v550
  %v562 = vpack.c.b16 %v553, %v552
  %v563 = vpack.c.b16 %v555, %v554
  %572 = vmatprep.subr.bf16.mxu0 0
  %573 = vmatpush1.bf16.msra.mxu0 %v556
  %574 = vmatprep.subr.bf16.mxu0 0
  %575 = vmatpush1.bf16.msra.mxu0 %v557
  %576 = vmatprep.subr.bf16.mxu0 0
  %577 = vmatpush1.bf16.msra.mxu0 %v558
  %578 = vmatprep.subr.bf16.mxu0 0
  %579 = vmatpush1.bf16.msra.mxu0 %v559
  %580 = vmatprep.subr.bf16.mxu0 0
  %581 = vmatpush1.bf16.msra.mxu0 %v560
  %582 = vmatprep.subr.bf16.mxu0 0
  %583 = vmatpush1.bf16.msra.mxu0 %v561
  %584 = vmatprep.subr.bf16.mxu0 0
  %585 = vmatpush1.bf16.msra.mxu0 %v562
  %586 = vmatprep.subr.bf16.mxu0 0
  %587 = vmatpush1.bf16.msra.mxu0 %v563
  %588 = vmatprep.subr.bf16.mxu0 0
  %589 = vmatpush1.bf16.msra.mxu0 0
  %590 = vmatprep.subr.bf16.mxu0 0
  %591 = vmatpush1.bf16.msra.mxu0 0
  %592 = vmatprep.subr.bf16.mxu0 0
  %593 = vmatpush1.bf16.msra.mxu0 0
  %594 = vmatprep.subr.bf16.mxu0 0
  %595 = vmatpush1.bf16.msra.mxu0 0
  %596 = vmatprep.subr.bf16.mxu0 0
  %597 = vmatpush1.bf16.msra.mxu0 0
  %598 = vmatprep.subr.bf16.mxu0 0
  %599 = vmatpush1.bf16.msra.mxu0 0
  %600 = vmatprep.subr.bf16.mxu0 0
  %601 = vmatpush1.bf16.msra.mxu0 0
  %602 = vmatprep.subr.bf16.mxu0 0
  %603 = vmatpush1.bf16.msra.mxu0 0
  %604 = vmatprep.mubr.bf16.mxu0 0
  %605 = vmatmul.mubr.bf16.gmra.mrb[0].mxu0 %v500
  %v606 = vpop.f32.mrb[0].mxu0
  %v607 = vadd.f32 %v522, %v606
  %v608 = vpop.f32.mrb[0].mxu0
  %v609 = vpop.f32.mrb[0].mxu0
  %v610 = vpop.f32.mrb[0].mxu0
  %611 = vdwg.mxu0
  %612 = vmax.xlane.f32.xlu0 %v607
  %v613 = vpop.xlane.xlu0 %612
  %v614 = vsub.f32 %v607, %v613
  %v615 = vmul.f32 %v614, 1.442695
  %v616 = vpow.pop %v615
  %617 = vadd.xlane.f32.xlu0 %v616
  %v618 = vpop.xlane.xlu0 %617
  %v619 = vlog2.pop %v618
  %v620 = vmul.f32 %v619, 0.6931472
  %v621 = vadd.f32 %v620, %v613
  %v622 = vsub.f32 %v607, %v621
  %623 = vst [vmem:[%s7] sm:$0xff] %v622
  // Predicated region
  $region30: #{fashion_cnn_forward.5} parent=0 // pred_check
    _
  $region31: #{fashion_cnn_forward.5} parent=0 // pred_check_branch
    %625 = sbr.rel (0) target = $region33
  $region32: #{fashion_cnn_forward.5} parent=0 // pred_region
    _
  $region33: #{fashion_cnn_forward.5} parent=0 // pred_fallthru
    _
  // Predicated region
  $region34: #{fashion_cnn_forward.5} parent=0 // pred_check
    _
  $region35: #{fashion_cnn_forward.5} parent=0 // pred_check_branch
    %627 = sbr.rel (0) target = $region37
  $region36: #{fashion_cnn_forward.5} parent=0 // pred_region
    _
  $region37: #{fashion_cnn_forward.5} parent=0 // pred_fallthru
    _

</llo_original>
